<compile_context>
chip_gen: v5e
topology: v5e:2x2
jax: 0.10.0
libtpu: 0.0.40
codegen_flags: <defaults>
</compile_context>

<pallas_src>
import functools
import math

import jax
import jax.numpy as jnp
from jax import lax
from jax.experimental import pallas as pl
from jax.experimental.pallas import tpu as pltpu

NEG_INF = -1e30
LN_EPS = 1e-5


# ---------------------------------------------------------------------------
# in-kernel math helpers (all f32)
# ---------------------------------------------------------------------------
def _erf_approx(z):
  # Abramowitz & Stegun 7.1.26, |abs err| < 1.5e-7 (float32-accurate).
  a1, a2, a3, a4, a5 = (0.254829592, -0.284496736, 1.421413741,
                        -1.453152027, 1.061405429)
  p = 0.3275911
  sgn = jnp.where(z >= 0.0, 1.0, -1.0)
  az = jnp.abs(z)
  t = pl.reciprocal(1.0 + p * az, approx=True)      # EUP slot, off the VALU
  poly = ((((a5 * t + a4) * t + a3) * t + a2) * t + a1) * t
  return sgn * (1.0 - poly * jnp.exp(-az * az))


def _gelu_exact(z):
  # nn.GELU() default (erf-based), matching PyTorch semantics.
  return 0.5 * z * (1.0 + _erf_approx(z * 0.7071067811865476))


def _layernorm(z, g, b):
  mu = jnp.mean(z, axis=-1, keepdims=True)
  c = z - mu
  var = jnp.mean(c * c, axis=-1, keepdims=True)
  return c * lax.rsqrt(var + LN_EPS) * g + b


def _softmax(a):
  m = jnp.max(a, axis=-1, keepdims=True)
  e = jnp.exp(a - m)
  return e * pl.reciprocal(jnp.sum(e, axis=-1, keepdims=True), approx=True)


def _mm(a_f32, w_bf16):
  # MXU matmul: bf16 operands, f32 accumulation.
  return jnp.dot(a_f32.astype(jnp.bfloat16), w_bf16,
                 preferred_element_type=jnp.float32)


def _mha_proj(q, k, v, wp, n_head, causal):
  """Multi-head attention with the output projection folded in.

  q: (Tq, C) f32; k, v: (Tk, C) f32; wp: (C, C) bf16 in [in, out] layout.
  Returns (softmax(q k^T / sqrt(hd)) v) @ wp   -> (Tq, C) f32 (bias added by caller).
  """
  tq, c = q.shape
  tk = k.shape[0]
  hd = c // n_head
  qs = (q * (1.0 / math.sqrt(hd))).astype(jnp.bfloat16)   # scale folded into q
  kb = k.astype(jnp.bfloat16)
  vb = v.astype(jnp.bfloat16)
  if causal:
    row = lax.broadcasted_iota(jnp.int32, (tq, tk), 0)
    col = lax.broadcasted_iota(jnp.int32, (tq, tk), 1)
    keep = row >= col
  # Contract the head dim of both operands -> no explicit k.T (XLU) transpose.
  dn = (((1,), (1,)), ((), ()))
  out = None
  for h in range(n_head):                 # static unroll over heads
    sl = slice(h * hd, (h + 1) * hd)
    att = lax.dot_general(qs[:, sl], kb[:, sl], dn,
                          preferred_element_type=jnp.float32)     # (Tq, Tk)
    if causal:
      att = jnp.where(keep, att, NEG_INF)
    p = _softmax(att).astype(jnp.bfloat16)
    y_h = jnp.dot(p, vb[:, sl], preferred_element_type=jnp.float32)  # (Tq, hd)
    # Fold the output projection per head instead of a lane concatenate.
    o_h = jnp.dot(y_h.astype(jnp.bfloat16), wp[sl, :],
                  preferred_element_type=jnp.float32)                # (Tq, C)
    out = o_h if out is None else out + o_h
  return out


# ---------------------------------------------------------------------------
# stage 1 kernel: self-attention + cross-attention (one batch element / step)
# ---------------------------------------------------------------------------
def _attn_block_kernel(n_head,
                       x_ref, ctx_ref,
                       ln1_g_ref, ln1_b_ref, ln2_g_ref, ln2_b_ref,
                       qkv_w_ref, qkv_b_ref, sproj_w_ref, sproj_b_ref,
                       ckv_w_ref, ckv_b_ref, cq_w_ref, cq_b_ref,
                       cproj_w_ref, cproj_b_ref,
                       o_ref):
  x = x_ref[0].astype(jnp.float32)          # (T, C)
  ctx = ctx_ref[0].astype(jnp.float32)      # (Tc, Dctx)
  c = x.shape[-1]

  # ---- causal self-attention on ln1(x); fused QKV projection ----
  h1 = _layernorm(x, ln1_g_ref[...], ln1_b_ref[...])
  qkv = _mm(h1, qkv_w_ref[...]) + qkv_b_ref[...]               # (T, 3C) f32
  q, k, v = qkv[:, :c], qkv[:, c:2 * c], qkv[:, 2 * c:]
  y = _mha_proj(q, k, v, sproj_w_ref[...], n_head, causal=True)
  x = x + y + sproj_b_ref[...]

  # ---- cross-attention: queries from context, K/V from ln2(x) ----
  h2 = _layernorm(x, ln2_g_ref[...], ln2_b_ref[...])
  ckv = _mm(h2, ckv_w_ref[...]) + ckv_b_ref[...]               # (T, 2C) f32
  ck, cv = ckv[:, :c], ckv[:, c:]
  cq = _mm(ctx, cq_w_ref[...]) + cq_b_ref[...]                 # (Tc, C) f32
  yc = _mha_proj(cq, ck, cv, cproj_w_ref[...], n_head, causal=False)
  x = x + yc + cproj_b_ref[...]             # residual requires Tc == T

  o_ref[0] = x.astype(o_ref.dtype)


# ---------------------------------------------------------------------------
# stage 2 kernel: MLP with streamed W1/W2 hidden-dim chunks (accumulator grid)
# ---------------------------------------------------------------------------
def _mlp_kernel(x_ref, ln3_g_ref, ln3_b_ref,
                w1_ref, b1_ref, w2_ref, b2_ref,
                o_ref, h3_ref, acc_ref):
  j = pl.program_id(2)

  @pl.when(j == 0)
  def _init():
    xt = x_ref[0].astype(jnp.float32)                           # (tq, C)
    h3_ref[...] = _layernorm(xt, ln3_g_ref[...], ln3_b_ref[...])
    acc_ref[...] = xt + b2_ref[...]                             # residual + out bias

  h = jnp.dot(h3_ref[...].astype(jnp.bfloat16), w1_ref[...],
              preferred_element_type=jnp.float32) + b1_ref[...]  # (tq, hc)
  h = _gelu_exact(h)
  acc_ref[...] += jnp.dot(h.astype(jnp.bfloat16), w2_ref[...],
                          preferred_element_type=jnp.float32)    # (tq, C)

  @pl.when(j == pl.num_programs(2) - 1)
  def _finish():
    o_ref[0] = acc_ref[...].astype(o_ref.dtype)


# ---------------------------------------------------------------------------
# wrapper
# ---------------------------------------------------------------------------
def _full_spec_1d_grid(shape):
  nd = len(shape)
  return pl.BlockSpec(shape, lambda b, _n=nd: (0,) * _n)


def _compiler_params(sem, resident_bytes):
  # Size the scoped VMEM limit to the footprint (double-buffered) with margin.
  limit = int(min(max(4 * resident_bytes + (8 << 20), 16 << 20), 48 << 20))
  return pltpu.CompilerParams(dimension_semantics=sem, vmem_limit_bytes=limit)


def block_forward(x, context, params, n_head, *, q_tile=None, mlp_chunk=512):
  """Forward pass of one transformer Block (dropout = identity)."""
  B, T, C = x.shape
  _, Tc, Dctx = context.shape
  assert Tc == T, "residual add requires context length == sequence length"
  assert C % n_head == 0

  # ---------------- stage 1: self-attention + cross-attention ----------------
  attn_weights = [
      params['ln1_g'], params['ln1_b'], params['ln2_g'], params['ln2_b'],
      params['qkv_w'], params['qkv_b'], params['sproj_w'], params['sproj_b'],
      params['ckv_w'], params['ckv_b'], params['cq_w'], params['cq_b'],
      params['cproj_w'], params['cproj_b'],
  ]
  resident = sum(int(a.size) * a.dtype.itemsize for a in attn_weights)
  resident += (T * C + Tc * Dctx) * 4
  # TODO(synk): for long T / large C, stream qkv_w/ckv_w via memory_space=pl.ANY
  # and tile self-attention queries flash-style (precomputed K/V pass).
  x1 = pl.pallas_call(
      functools.partial(_attn_block_kernel, n_head),
      out_shape=jax.ShapeDtypeStruct((B, T, C), jnp.float32),
      grid=(B,),
      in_specs=[pl.BlockSpec((1, T, C), lambda b: (b, 0, 0)),
                pl.BlockSpec((1, Tc, Dctx), lambda b: (b, 0, 0))] +
               [_full_spec_1d_grid(w.shape) for w in attn_weights],
      out_specs=pl.BlockSpec((1, T, C), lambda b: (b, 0, 0)),
      compiler_params=_compiler_params(("parallel",), resident),
  )(x, context, *attn_weights)

  # ---------------- stage 2: MLP (ln3 -> 4C GELU -> C) -----------------------
  if q_tile is None:
    q_tile = T if T <= 256 else 256
  assert T % q_tile == 0 and (q_tile % 8 == 0 or q_tile == T)
  H4 = 4 * C
  hc = min(mlp_chunk, H4)
  assert H4 % hc == 0
  n_tq, n_hc = T // q_tile, H4 // hc

  mlp_resident = (C * hc + hc * C) * 2 + q_tile * C * 4 * 4
  x2 = pl.pallas_call(
      _mlp_kernel,
      out_shape=jax.ShapeDtypeStruct((B, T, C), x.dtype),
      grid=(B, n_tq, n_hc),
      in_specs=[
          pl.BlockSpec((1, q_tile, C), lambda b, i, j: (b, i, 0)),
          pl.BlockSpec((1, C), lambda b, i, j: (0, 0)),     # ln3_g
          pl.BlockSpec((1, C), lambda b, i, j: (0, 0)),     # ln3_b
          pl.BlockSpec((C, hc), lambda b, i, j: (0, j)),    # w1 chunk (streamed)
          pl.BlockSpec((1, hc), lambda b, i, j: (0, j)),    # b1 chunk
          pl.BlockSpec((hc, C), lambda b, i, j: (j, 0)),    # w2 chunk (streamed)
          pl.BlockSpec((1, C), lambda b, i, j: (0, 0)),     # b2
      ],
      out_specs=pl.BlockSpec((1, q_tile, C), lambda b, i, j: (b, i, 0)),
      scratch_shapes=[pltpu.VMEM((q_tile, C), jnp.float32),   # ln3(x) tile
                      pltpu.VMEM((q_tile, C), jnp.float32)],  # accumulator
      compiler_params=_compiler_params(
          ("parallel", "parallel", "arbitrary"), mlp_resident),
  )(x1, params['ln3_g'], params['ln3_b'],
    params['w1'], params['b1'], params['w2'], params['b2'])
  return x2


# ---------------------------------------------------------------------------
# deterministic parameter init (shapes follow the PyTorch module; weights bf16)
# ---------------------------------------------------------------------------
def init_params(key, C, Dctx, w_dtype=jnp.bfloat16):
  std = 0.02
  ks = iter(jax.random.split(key, 32))
  nxt = lambda: next(ks)
  w = lambda i, o: jax.random.normal(nxt(), (i, o), jnp.float32) * std   # [in,out]
  b = lambda o: jax.random.normal(nxt(), (1, o), jnp.float32) * std
  lng = lambda: 1.0 + 0.05 * jax.random.normal(nxt(), (1, C), jnp.float32)
  lnb = lambda: 0.05 * jax.random.normal(nxt(), (1, C), jnp.float32)

  qkv_w = jnp.concatenate([w(C, C), w(C, C), w(C, C)], axis=1)   # (C, 3C)
  qkv_b = jnp.concatenate([b(C), b(C), b(C)], axis=1)            # (1, 3C)
  ckv_w = jnp.concatenate([w(C, C), w(C, C)], axis=1)            # (C, 2C)
  ckv_b = jnp.concatenate([b(C), b(C)], axis=1)                  # (1, 2C)

  return dict(
      ln1_g=lng(), ln1_b=lnb(), ln2_g=lng(), ln2_b=lnb(),
      ln3_g=lng(), ln3_b=lnb(),
      qkv_w=qkv_w.astype(w_dtype), qkv_b=qkv_b,
      sproj_w=w(C, C).astype(w_dtype), sproj_b=b(C),
      ckv_w=ckv_w.astype(w_dtype), ckv_b=ckv_b,
      cq_w=w(Dctx, C).astype(w_dtype), cq_b=b(C),
      cproj_w=w(C, C).astype(w_dtype), cproj_b=b(C),
      w1=w(C, 4 * C).astype(w_dtype), b1=b(4 * C),
      w2=w(4 * C, C).astype(w_dtype), b2=b(C),
  )


# ---------------------------------------------------------------------------
# pure-JAX f32 reference (mirrors the PyTorch forward) for verification
# ---------------------------------------------------------------------------
def reference_forward(x, ctx, params, n_head):
  from jax.scipy.special import erf
  p = {k: v.astype(jnp.float32) for k, v in params.items()}
  C = x.shape[-1]
  hd = C // n_head

  def ln(z, g, b):
    mu = jnp.mean(z, -1, keepdims=True)
    var = jnp.mean((z - mu) ** 2, -1, keepdims=True)
    return (z - mu) / jnp.sqrt(var + LN_EPS) * g + b

  def mha(q, k, v, causal):
    B, Tq, _ = q.shape
    Tk = k.shape[1]
    qh = q.reshape(B, Tq, n_head, hd).transpose(0, 2, 1, 3)
    kh = k.reshape(B, Tk, n_head, hd).transpose(0, 2, 1, 3)
    vh = v.reshape(B, Tk, n_head, hd).transpose(0, 2, 1, 3)
    att = jnp.einsum('bhqd,bhkd->bhqk', qh, kh) / math.sqrt(hd)
    if causal:
      keep = jnp.tril(jnp.ones((Tq, Tk), bool))
      att = jnp.where(keep, att, NEG_INF)
    att = jax.nn.softmax(att, axis=-1)
    y = jnp.einsum('bhqk,bhkd->bhqd', att, vh)
    return y.transpose(0, 2, 1, 3).reshape(B, Tq, C)

  h1 = ln(x, p['ln1_g'], p['ln1_b'])
  qkv = h1 @ p['qkv_w'] + p['qkv_b']
  q, k, v = qkv[..., :C], qkv[..., C:2 * C], qkv[..., 2 * C:]
  x = x + mha(q, k, v, True) @ p['sproj_w'] + p['sproj_b']

  h2 = ln(x, p['ln2_g'], p['ln2_b'])
  ckv = h2 @ p['ckv_w'] + p['ckv_b']
  ck, cv = ckv[..., :C], ckv[..., C:]
  cq = ctx @ p['cq_w'] + p['cq_b']
  x = x + mha(cq, ck, cv, False) @ p['cproj_w'] + p['cproj_b']

  h3 = ln(x, p['ln3_g'], p['ln3_b'])
  hh = h3 @ p['w1'] + p['b1']
  hh = 0.5 * hh * (1.0 + erf(hh / math.sqrt(2.0)))   # exact GELU
  x = x + hh @ p['w2'] + p['b2']
  return x


if __name__ == "__main__":
  # lane-dense small config: n_embd=128, n_head=4 (hd=32), T=16, context_dim=128
  B, T, C, NH, DCTX = 2, 16, 128, 4, 128
  key = jax.random.PRNGKey(0)
  kx, kc, kp = jax.random.split(key, 3)
  x = jax.random.normal(kx, (B, T, C), jnp.float32)
  ctx = jax.random.normal(kc, (B, T, DCTX), jnp.float32)
  params = init_params(kp, C, DCTX)

  # q_tile=8 and mlp_chunk=256 exercise both the sequence tiling and the
  # hidden-chunk accumulation paths at this small size.
  out = block_forward(x, ctx, params, NH, q_tile=8, mlp_chunk=256)
  out = jax.block_until_ready(out)

  ref = reference_forward(x, ctx, params, NH)
  err = float(jnp.max(jnp.abs(out - ref)))
  if not jnp.allclose(out, ref, rtol=2e-2, atol=2e-2):
    raise RuntimeError(f"mismatch vs reference: max abs diff = {err}")
  print("KERNEL_OK")
</pallas_src>

<mosaic_0001>
module attributes {stable_mosaic.version = 11 : i64} {
  func.func @_attn_block_kernel(%arg0: i32, %arg1: memref<1x16x128xf32, #tpu.memory_space<vmem>>, %arg2: memref<1x16x128xf32, #tpu.memory_space<vmem>>, %arg3: memref<1x128xf32, #tpu.memory_space<vmem>>, %arg4: memref<1x128xf32, #tpu.memory_space<vmem>>, %arg5: memref<1x128xf32, #tpu.memory_space<vmem>>, %arg6: memref<1x128xf32, #tpu.memory_space<vmem>>, %arg7: memref<128x384xbf16, #tpu.memory_space<vmem>>, %arg8: memref<1x384xf32, #tpu.memory_space<vmem>>, %arg9: memref<128x128xbf16, #tpu.memory_space<vmem>>, %arg10: memref<1x128xf32, #tpu.memory_space<vmem>>, %arg11: memref<128x256xbf16, #tpu.memory_space<vmem>>, %arg12: memref<1x256xf32, #tpu.memory_space<vmem>>, %arg13: memref<128x128xbf16, #tpu.memory_space<vmem>>, %arg14: memref<1x128xf32, #tpu.memory_space<vmem>>, %arg15: memref<128x128xbf16, #tpu.memory_space<vmem>>, %arg16: memref<1x128xf32, #tpu.memory_space<vmem>>, %arg17: memref<1x16x128xf32, #tpu.memory_space<vmem>>) attributes {dimension_semantics = [#tpu.dimension_semantics<parallel>], iteration_bounds = array<i64: 2>, scalar_prefetch = 0 : i64, scratch_operands = 0 : i64, tpu.core_type = #tpu.core_type<tc>, window_params = [{transform_indices = @transform_0, window_bounds = array<i64: 1, 16, 128>}, {transform_indices = @transform_1, window_bounds = array<i64: 1, 16, 128>}, {pipeline_mode = #tpu.pipeline_mode<synchronous>, transform_indices = @transform_2, window_bounds = array<i64: 1, 128>}, {pipeline_mode = #tpu.pipeline_mode<synchronous>, transform_indices = @transform_3, window_bounds = array<i64: 1, 128>}, {pipeline_mode = #tpu.pipeline_mode<synchronous>, transform_indices = @transform_4, window_bounds = array<i64: 1, 128>}, {pipeline_mode = #tpu.pipeline_mode<synchronous>, transform_indices = @transform_5, window_bounds = array<i64: 1, 128>}, {pipeline_mode = #tpu.pipeline_mode<synchronous>, transform_indices = @transform_6, window_bounds = array<i64: 128, 384>}, {pipeline_mode = #tpu.pipeline_mode<synchronous>, transform_indices = @transform_7, window_bounds = array<i64: 1, 384>}, {pipeline_mode = #tpu.pipeline_mode<synchronous>, transform_indices = @transform_8, window_bounds = array<i64: 128, 128>}, {pipeline_mode = #tpu.pipeline_mode<synchronous>, transform_indices = @transform_9, window_bounds = array<i64: 1, 128>}, {pipeline_mode = #tpu.pipeline_mode<synchronous>, transform_indices = @transform_10, window_bounds = array<i64: 128, 256>}, {pipeline_mode = #tpu.pipeline_mode<synchronous>, transform_indices = @transform_11, window_bounds = array<i64: 1, 256>}, {pipeline_mode = #tpu.pipeline_mode<synchronous>, transform_indices = @transform_12, window_bounds = array<i64: 128, 128>}, {pipeline_mode = #tpu.pipeline_mode<synchronous>, transform_indices = @transform_13, window_bounds = array<i64: 1, 128>}, {pipeline_mode = #tpu.pipeline_mode<synchronous>, transform_indices = @transform_14, window_bounds = array<i64: 128, 128>}, {pipeline_mode = #tpu.pipeline_mode<synchronous>, transform_indices = @transform_15, window_bounds = array<i64: 1, 128>}, {transform_indices = @transform_16, window_bounds = array<i64: 1, 16, 128>}]} {
    %c0 = arith.constant 0 : index
    %c0_0 = arith.constant 0 : index
    %c0_1 = arith.constant 0 : index
    %0 = vector.load %arg1[%c0, %c0_0, %c0_1] : memref<1x16x128xf32, #tpu.memory_space<vmem>>, vector<1x16x128xf32>
    %1 = vector.shape_cast %0 : vector<1x16x128xf32> to vector<16x128xf32>
    %c0_2 = arith.constant 0 : index
    %c0_3 = arith.constant 0 : index
    %c0_4 = arith.constant 0 : index
    %2 = vector.load %arg2[%c0_2, %c0_3, %c0_4] : memref<1x16x128xf32, #tpu.memory_space<vmem>>, vector<1x16x128xf32>
    %3 = vector.shape_cast %2 : vector<1x16x128xf32> to vector<16x128xf32>
    %c0_5 = arith.constant 0 : index
    %c0_6 = arith.constant 0 : index
    %4 = vector.load %arg3[%c0_5, %c0_6] : memref<1x128xf32, #tpu.memory_space<vmem>>, vector<1x128xf32>
    %c0_7 = arith.constant 0 : index
    %c0_8 = arith.constant 0 : index
    %5 = vector.load %arg4[%c0_7, %c0_8] : memref<1x128xf32, #tpu.memory_space<vmem>>, vector<1x128xf32>
    %cst = arith.constant dense<0.000000e+00> : vector<16xf32>
    %6 = vector.multi_reduction <add>, %1, %cst [1] : vector<16x128xf32> to vector<16xf32>
    %7 = vector.shape_cast %6 : vector<16xf32> to vector<16x1xf32>
    %cst_9 = arith.constant 1.280000e+02 : f32
    %8 = vector.broadcast %cst_9 : f32 to vector<16x1xf32>
    %9 = arith.divf %7, %8 : vector<16x1xf32>
    %10 = vector.broadcast %9 : vector<16x1xf32> to vector<16x128xf32>
    %11 = arith.subf %1, %10 : vector<16x128xf32>
    %12 = arith.mulf %11, %11 : vector<16x128xf32>
    %cst_10 = arith.constant dense<0.000000e+00> : vector<16xf32>
    %13 = vector.multi_reduction <add>, %12, %cst_10 [1] : vector<16x128xf32> to vector<16xf32>
    %14 = vector.shape_cast %13 : vector<16xf32> to vector<16x1xf32>
    %cst_11 = arith.constant 1.280000e+02 : f32
    %15 = vector.broadcast %cst_11 : f32 to vector<16x1xf32>
    %16 = arith.divf %14, %15 : vector<16x1xf32>
    %cst_12 = arith.constant 9.99999974E-6 : f32
    %17 = vector.broadcast %cst_12 : f32 to vector<16x1xf32>
    %18 = arith.addf %16, %17 : vector<16x1xf32>
    %19 = math.rsqrt %18 : vector<16x1xf32>
    %20 = vector.broadcast %19 : vector<16x1xf32> to vector<16x128xf32>
    %21 = arith.mulf %11, %20 : vector<16x128xf32>
    %22 = vector.broadcast %4 : vector<1x128xf32> to vector<16x128xf32>
    %23 = arith.mulf %21, %22 : vector<16x128xf32>
    %24 = vector.broadcast %5 : vector<1x128xf32> to vector<16x128xf32>
    %25 = arith.addf %23, %24 : vector<16x128xf32>
    %c0_13 = arith.constant 0 : index
    %c0_14 = arith.constant 0 : index
    %26 = vector.load %arg7[%c0_13, %c0_14] : memref<128x384xbf16, #tpu.memory_space<vmem>>, vector<128x384xbf16>
    %27 = arith.truncf %25 : vector<16x128xf32> to vector<16x128xbf16>
    %cst_15 = arith.constant dense<0.000000e+00> : vector<16x384xf32>
    %28 = tpu.matmul %27, %26, %cst_15 {dimension_numbers = #tpu.dot_dimension_numbers<[1], [0], [0], [1], [0, 0, 1, 1], [], []>} : vector<16x128xbf16>, vector<128x384xbf16>, vector<16x384xf32> -> vector<16x384xf32>
    %c0_16 = arith.constant 0 : index
    %c0_17 = arith.constant 0 : index
    %29 = vector.load %arg8[%c0_16, %c0_17] : memref<1x384xf32, #tpu.memory_space<vmem>>, vector<1x384xf32>
    %30 = vector.broadcast %29 : vector<1x384xf32> to vector<16x384xf32>
    %31 = arith.addf %28, %30 : vector<16x384xf32>
    %32 = vector.extract_strided_slice %31 {offsets = [0, 0], sizes = [16, 128], strides = [1, 1]} : vector<16x384xf32> to vector<16x128xf32>
    %33 = vector.extract_strided_slice %31 {offsets = [0, 128], sizes = [16, 128], strides = [1, 1]} : vector<16x384xf32> to vector<16x128xf32>
    %34 = vector.extract_strided_slice %31 {offsets = [0, 256], sizes = [16, 128], strides = [1, 1]} : vector<16x384xf32> to vector<16x128xf32>
    %c0_18 = arith.constant 0 : index
    %c0_19 = arith.constant 0 : index
    %35 = vector.load %arg9[%c0_18, %c0_19] : memref<128x128xbf16, #tpu.memory_space<vmem>>, vector<128x128xbf16>
    %cst_20 = arith.constant 0.176776692 : f32
    %36 = vector.broadcast %cst_20 : f32 to vector<16x128xf32>
    %37 = arith.mulf %32, %36 : vector<16x128xf32>
    %38 = arith.truncf %37 : vector<16x128xf32> to vector<16x128xbf16>
    %39 = arith.truncf %33 : vector<16x128xf32> to vector<16x128xbf16>
    %40 = arith.truncf %34 : vector<16x128xf32> to vector<16x128xbf16>
    %41 = tpu.iota {dimensions = array<i32: 0>} : vector<16x16xi32>
    %42 = tpu.iota {dimensions = array<i32: 1>} : vector<16x16xi32>
    %43 = arith.cmpi sge, %41, %42 : vector<16x16xi32>
    %44 = vector.extract_strided_slice %38 {offsets = [0, 0], sizes = [16, 32], strides = [1, 1]} : vector<16x128xbf16> to vector<16x32xbf16>
    %45 = vector.extract_strided_slice %39 {offsets = [0, 0], sizes = [16, 32], strides = [1, 1]} : vector<16x128xbf16> to vector<16x32xbf16>
    %cst_21 = arith.constant dense<0.000000e+00> : vector<16x16xf32>
    %46 = tpu.matmul %44, %45, %cst_21 {dimension_numbers = #tpu.dot_dimension_numbers<[1], [1], [0], [0], [0, 0, 1, 0], [], []>} : vector<16x32xbf16>, vector<16x32xbf16>, vector<16x16xf32> -> vector<16x16xf32>
    %cst_22 = arith.constant -1.000000e+30 : f32
    %47 = vector.broadcast %cst_22 : f32 to vector<16x16xf32>
    %48 = arith.select %43, %46, %47 : vector<16x16xi1>, vector<16x16xf32>
    %cst_23 = arith.constant dense<0xFF800000> : vector<16xf32>
    %49 = vector.multi_reduction <maximumf>, %48, %cst_23 [1] : vector<16x16xf32> to vector<16xf32>
    %50 = vector.shape_cast %49 : vector<16xf32> to vector<16x1xf32>
    %51 = vector.broadcast %50 : vector<16x1xf32> to vector<16x16xf32>
    %52 = arith.subf %48, %51 : vector<16x16xf32>
    %53 = math.exp %52 : vector<16x16xf32>
    %cst_24 = arith.constant dense<0.000000e+00> : vector<16xf32>
    %54 = vector.multi_reduction <add>, %53, %cst_24 [1] : vector<16x16xf32> to vector<16xf32>
    %55 = vector.shape_cast %54 : vector<16xf32> to vector<16x1xf32>
    %56 = tpu.reciprocal %55 {approx = true} : vector<16x1xf32> -> vector<16x1xf32>
    %57 = vector.broadcast %56 : vector<16x1xf32> to vector<16x16xf32>
    %58 = arith.mulf %53, %57 : vector<16x16xf32>
    %59 = arith.truncf %58 : vector<16x16xf32> to vector<16x16xbf16>
    %60 = vector.extract_strided_slice %40 {offsets = [0, 0], sizes = [16, 32], strides = [1, 1]} : vector<16x128xbf16> to vector<16x32xbf16>
    %cst_25 = arith.constant dense<0.000000e+00> : vector<16x32xf32>
    %61 = tpu.matmul %59, %60, %cst_25 {dimension_numbers = #tpu.dot_dimension_numbers<[1], [0], [0], [1], [0, 0, 1, 1], [], []>} : vector<16x16xbf16>, vector<16x32xbf16>, vector<16x32xf32> -> vector<16x32xf32>
    %62 = arith.truncf %61 : vector<16x32xf32> to vector<16x32xbf16>
    %63 = vector.extract_strided_slice %35 {offsets = [0, 0], sizes = [32, 128], strides = [1, 1]} : vector<128x128xbf16> to vector<32x128xbf16>
    %cst_26 = arith.constant dense<0.000000e+00> : vector<16x128xf32>
    %64 = tpu.matmul %62, %63, %cst_26 {dimension_numbers = #tpu.dot_dimension_numbers<[1], [0], [0], [1], [0, 0, 1, 1], [], []>} : vector<16x32xbf16>, vector<32x128xbf16>, vector<16x128xf32> -> vector<16x128xf32>
    %65 = vector.extract_strided_slice %38 {offsets = [0, 32], sizes = [16, 32], strides = [1, 1]} : vector<16x128xbf16> to vector<16x32xbf16>
    %66 = vector.extract_strided_slice %39 {offsets = [0, 32], sizes = [16, 32], strides = [1, 1]} : vector<16x128xbf16> to vector<16x32xbf16>
    %cst_27 = arith.constant dense<0.000000e+00> : vector<16x16xf32>
    %67 = tpu.matmul %65, %66, %cst_27 {dimension_numbers = #tpu.dot_dimension_numbers<[1], [1], [0], [0], [0, 0, 1, 0], [], []>} : vector<16x32xbf16>, vector<16x32xbf16>, vector<16x16xf32> -> vector<16x16xf32>
    %cst_28 = arith.constant -1.000000e+30 : f32
    %68 = vector.broadcast %cst_28 : f32 to vector<16x16xf32>
    %69 = arith.select %43, %67, %68 : vector<16x16xi1>, vector<16x16xf32>
    %cst_29 = arith.constant dense<0xFF800000> : vector<16xf32>
    %70 = vector.multi_reduction <maximumf>, %69, %cst_29 [1] : vector<16x16xf32> to vector<16xf32>
    %71 = vector.shape_cast %70 : vector<16xf32> to vector<16x1xf32>
    %72 = vector.broadcast %71 : vector<16x1xf32> to vector<16x16xf32>
    %73 = arith.subf %69, %72 : vector<16x16xf32>
    %74 = math.exp %73 : vector<16x16xf32>
    %cst_30 = arith.constant dense<0.000000e+00> : vector<16xf32>
    %75 = vector.multi_reduction <add>, %74, %cst_30 [1] : vector<16x16xf32> to vector<16xf32>
    %76 = vector.shape_cast %75 : vector<16xf32> to vector<16x1xf32>
    %77 = tpu.reciprocal %76 {approx = true} : vector<16x1xf32> -> vector<16x1xf32>
    %78 = vector.broadcast %77 : vector<16x1xf32> to vector<16x16xf32>
    %79 = arith.mulf %74, %78 : vector<16x16xf32>
    %80 = arith.truncf %79 : vector<16x16xf32> to vector<16x16xbf16>
    %81 = vector.extract_strided_slice %40 {offsets = [0, 32], sizes = [16, 32], strides = [1, 1]} : vector<16x128xbf16> to vector<16x32xbf16>
    %cst_31 = arith.constant dense<0.000000e+00> : vector<16x32xf32>
    %82 = tpu.matmul %80, %81, %cst_31 {dimension_numbers = #tpu.dot_dimension_numbers<[1], [0], [0], [1], [0, 0, 1, 1], [], []>} : vector<16x16xbf16>, vector<16x32xbf16>, vector<16x32xf32> -> vector<16x32xf32>
    %83 = arith.truncf %82 : vector<16x32xf32> to vector<16x32xbf16>
    %84 = vector.extract_strided_slice %35 {offsets = [32, 0], sizes = [32, 128], strides = [1, 1]} : vector<128x128xbf16> to vector<32x128xbf16>
    %cst_32 = arith.constant dense<0.000000e+00> : vector<16x128xf32>
    %85 = tpu.matmul %83, %84, %cst_32 {dimension_numbers = #tpu.dot_dimension_numbers<[1], [0], [0], [1], [0, 0, 1, 1], [], []>} : vector<16x32xbf16>, vector<32x128xbf16>, vector<16x128xf32> -> vector<16x128xf32>
    %86 = arith.addf %64, %85 : vector<16x128xf32>
    %87 = vector.extract_strided_slice %38 {offsets = [0, 64], sizes = [16, 32], strides = [1, 1]} : vector<16x128xbf16> to vector<16x32xbf16>
    %88 = vector.extract_strided_slice %39 {offsets = [0, 64], sizes = [16, 32], strides = [1, 1]} : vector<16x128xbf16> to vector<16x32xbf16>
    %cst_33 = arith.constant dense<0.000000e+00> : vector<16x16xf32>
    %89 = tpu.matmul %87, %88, %cst_33 {dimension_numbers = #tpu.dot_dimension_numbers<[1], [1], [0], [0], [0, 0, 1, 0], [], []>} : vector<16x32xbf16>, vector<16x32xbf16>, vector<16x16xf32> -> vector<16x16xf32>
    %cst_34 = arith.constant -1.000000e+30 : f32
    %90 = vector.broadcast %cst_34 : f32 to vector<16x16xf32>
    %91 = arith.select %43, %89, %90 : vector<16x16xi1>, vector<16x16xf32>
    %cst_35 = arith.constant dense<0xFF800000> : vector<16xf32>
    %92 = vector.multi_reduction <maximumf>, %91, %cst_35 [1] : vector<16x16xf32> to vector<16xf32>
    %93 = vector.shape_cast %92 : vector<16xf32> to vector<16x1xf32>
    %94 = vector.broadcast %93 : vector<16x1xf32> to vector<16x16xf32>
    %95 = arith.subf %91, %94 : vector<16x16xf32>
    %96 = math.exp %95 : vector<16x16xf32>
    %cst_36 = arith.constant dense<0.000000e+00> : vector<16xf32>
    %97 = vector.multi_reduction <add>, %96, %cst_36 [1] : vector<16x16xf32> to vector<16xf32>
    %98 = vector.shape_cast %97 : vector<16xf32> to vector<16x1xf32>
    %99 = tpu.reciprocal %98 {approx = true} : vector<16x1xf32> -> vector<16x1xf32>
    %100 = vector.broadcast %99 : vector<16x1xf32> to vector<16x16xf32>
    %101 = arith.mulf %96, %100 : vector<16x16xf32>
    %102 = arith.truncf %101 : vector<16x16xf32> to vector<16x16xbf16>
    %103 = vector.extract_strided_slice %40 {offsets = [0, 64], sizes = [16, 32], strides = [1, 1]} : vector<16x128xbf16> to vector<16x32xbf16>
    %cst_37 = arith.constant dense<0.000000e+00> : vector<16x32xf32>
    %104 = tpu.matmul %102, %103, %cst_37 {dimension_numbers = #tpu.dot_dimension_numbers<[1], [0], [0], [1], [0, 0, 1, 1], [], []>} : vector<16x16xbf16>, vector<16x32xbf16>, vector<16x32xf32> -> vector<16x32xf32>
    %105 = arith.truncf %104 : vector<16x32xf32> to vector<16x32xbf16>
    %106 = vector.extract_strided_slice %35 {offsets = [64, 0], sizes = [32, 128], strides = [1, 1]} : vector<128x128xbf16> to vector<32x128xbf16>
    %cst_38 = arith.constant dense<0.000000e+00> : vector<16x128xf32>
    %107 = tpu.matmul %105, %106, %cst_38 {dimension_numbers = #tpu.dot_dimension_numbers<[1], [0], [0], [1], [0, 0, 1, 1], [], []>} : vector<16x32xbf16>, vector<32x128xbf16>, vector<16x128xf32> -> vector<16x128xf32>
    %108 = arith.addf %86, %107 : vector<16x128xf32>
    %109 = vector.extract_strided_slice %38 {offsets = [0, 96], sizes = [16, 32], strides = [1, 1]} : vector<16x128xbf16> to vector<16x32xbf16>
    %110 = vector.extract_strided_slice %39 {offsets = [0, 96], sizes = [16, 32], strides = [1, 1]} : vector<16x128xbf16> to vector<16x32xbf16>
    %cst_39 = arith.constant dense<0.000000e+00> : vector<16x16xf32>
    %111 = tpu.matmul %109, %110, %cst_39 {dimension_numbers = #tpu.dot_dimension_numbers<[1], [1], [0], [0], [0, 0, 1, 0], [], []>} : vector<16x32xbf16>, vector<16x32xbf16>, vector<16x16xf32> -> vector<16x16xf32>
    %cst_40 = arith.constant -1.000000e+30 : f32
    %112 = vector.broadcast %cst_40 : f32 to vector<16x16xf32>
    %113 = arith.select %43, %111, %112 : vector<16x16xi1>, vector<16x16xf32>
    %cst_41 = arith.constant dense<0xFF800000> : vector<16xf32>
    %114 = vector.multi_reduction <maximumf>, %113, %cst_41 [1] : vector<16x16xf32> to vector<16xf32>
    %115 = vector.shape_cast %114 : vector<16xf32> to vector<16x1xf32>
    %116 = vector.broadcast %115 : vector<16x1xf32> to vector<16x16xf32>
    %117 = arith.subf %113, %116 : vector<16x16xf32>
    %118 = math.exp %117 : vector<16x16xf32>
    %cst_42 = arith.constant dense<0.000000e+00> : vector<16xf32>
    %119 = vector.multi_reduction <add>, %118, %cst_42 [1] : vector<16x16xf32> to vector<16xf32>
    %120 = vector.shape_cast %119 : vector<16xf32> to vector<16x1xf32>
    %121 = tpu.reciprocal %120 {approx = true} : vector<16x1xf32> -> vector<16x1xf32>
    %122 = vector.broadcast %121 : vector<16x1xf32> to vector<16x16xf32>
    %123 = arith.mulf %118, %122 : vector<16x16xf32>
    %124 = arith.truncf %123 : vector<16x16xf32> to vector<16x16xbf16>
    %125 = vector.extract_strided_slice %40 {offsets = [0, 96], sizes = [16, 32], strides = [1, 1]} : vector<16x128xbf16> to vector<16x32xbf16>
    %cst_43 = arith.constant dense<0.000000e+00> : vector<16x32xf32>
    %126 = tpu.matmul %124, %125, %cst_43 {dimension_numbers = #tpu.dot_dimension_numbers<[1], [0], [0], [1], [0, 0, 1, 1], [], []>} : vector<16x16xbf16>, vector<16x32xbf16>, vector<16x32xf32> -> vector<16x32xf32>
    %127 = arith.truncf %126 : vector<16x32xf32> to vector<16x32xbf16>
    %128 = vector.extract_strided_slice %35 {offsets = [96, 0], sizes = [32, 128], strides = [1, 1]} : vector<128x128xbf16> to vector<32x128xbf16>
    %cst_44 = arith.constant dense<0.000000e+00> : vector<16x128xf32>
    %129 = tpu.matmul %127, %128, %cst_44 {dimension_numbers = #tpu.dot_dimension_numbers<[1], [0], [0], [1], [0, 0, 1, 1], [], []>} : vector<16x32xbf16>, vector<32x128xbf16>, vector<16x128xf32> -> vector<16x128xf32>
    %130 = arith.addf %108, %129 : vector<16x128xf32>
    %131 = arith.addf %1, %130 : vector<16x128xf32>
    %c0_45 = arith.constant 0 : index
    %c0_46 = arith.constant 0 : index
    %132 = vector.load %arg10[%c0_45, %c0_46] : memref<1x128xf32, #tpu.memory_space<vmem>>, vector<1x128xf32>
    %133 = vector.broadcast %132 : vector<1x128xf32> to vector<16x128xf32>
    %134 = arith.addf %131, %133 : vector<16x128xf32>
    %c0_47 = arith.constant 0 : index
    %c0_48 = arith.constant 0 : index
    %135 = vector.load %arg5[%c0_47, %c0_48] : memref<1x128xf32, #tpu.memory_space<vmem>>, vector<1x128xf32>
    %c0_49 = arith.constant 0 : index
    %c0_50 = arith.constant 0 : index
    %136 = vector.load %arg6[%c0_49, %c0_50] : memref<1x128xf32, #tpu.memory_space<vmem>>, vector<1x128xf32>
    %cst_51 = arith.constant dense<0.000000e+00> : vector<16xf32>
    %137 = vector.multi_reduction <add>, %134, %cst_51 [1] : vector<16x128xf32> to vector<16xf32>
    %138 = vector.shape_cast %137 : vector<16xf32> to vector<16x1xf32>
    %cst_52 = arith.constant 1.280000e+02 : f32
    %139 = vector.broadcast %cst_52 : f32 to vector<16x1xf32>
    %140 = arith.divf %138, %139 : vector<16x1xf32>
    %141 = vector.broadcast %140 : vector<16x1xf32> to vector<16x128xf32>
    %142 = arith.subf %134, %141 : vector<16x128xf32>
    %143 = arith.mulf %142, %142 : vector<16x128xf32>
    %cst_53 = arith.constant dense<0.000000e+00> : vector<16xf32>
    %144 = vector.multi_reduction <add>, %143, %cst_53 [1] : vector<16x128xf32> to vector<16xf32>
    %145 = vector.shape_cast %144 : vector<16xf32> to vector<16x1xf32>
    %cst_54 = arith.constant 1.280000e+02 : f32
    %146 = vector.broadcast %cst_54 : f32 to vector<16x1xf32>
    %147 = arith.divf %145, %146 : vector<16x1xf32>
    %cst_55 = arith.constant 9.99999974E-6 : f32
    %148 = vector.broadcast %cst_55 : f32 to vector<16x1xf32>
    %149 = arith.addf %147, %148 : vector<16x1xf32>
    %150 = math.rsqrt %149 : vector<16x1xf32>
    %151 = vector.broadcast %150 : vector<16x1xf32> to vector<16x128xf32>
    %152 = arith.mulf %142, %151 : vector<16x128xf32>
    %153 = vector.broadcast %135 : vector<1x128xf32> to vector<16x128xf32>
    %154 = arith.mulf %152, %153 : vector<16x128xf32>
    %155 = vector.broadcast %136 : vector<1x128xf32> to vector<16x128xf32>
    %156 = arith.addf %154, %155 : vector<16x128xf32>
    %c0_56 = arith.constant 0 : index
    %c0_57 = arith.constant 0 : index
    %157 = vector.load %arg11[%c0_56, %c0_57] : memref<128x256xbf16, #tpu.memory_space<vmem>>, vector<128x256xbf16>
    %158 = arith.truncf %156 : vector<16x128xf32> to vector<16x128xbf16>
    %cst_58 = arith.constant dense<0.000000e+00> : vector<16x256xf32>
    %159 = tpu.matmul %158, %157, %cst_58 {dimension_numbers = #tpu.dot_dimension_numbers<[1], [0], [0], [1], [0, 0, 1, 1], [], []>} : vector<16x128xbf16>, vector<128x256xbf16>, vector<16x256xf32> -> vector<16x256xf32>
    %c0_59 = arith.constant 0 : index
    %c0_60 = arith.constant 0 : index
    %160 = vector.load %arg12[%c0_59, %c0_60] : memref<1x256xf32, #tpu.memory_space<vmem>>, vector<1x256xf32>
    %161 = vector.broadcast %160 : vector<1x256xf32> to vector<16x256xf32>
    %162 = arith.addf %159, %161 : vector<16x256xf32>
    %163 = vector.extract_strided_slice %162 {offsets = [0, 0], sizes = [16, 128], strides = [1, 1]} : vector<16x256xf32> to vector<16x128xf32>
    %164 = vector.extract_strided_slice %162 {offsets = [0, 128], sizes = [16, 128], strides = [1, 1]} : vector<16x256xf32> to vector<16x128xf32>
    %c0_61 = arith.constant 0 : index
    %c0_62 = arith.constant 0 : index
    %165 = vector.load %arg13[%c0_61, %c0_62] : memref<128x128xbf16, #tpu.memory_space<vmem>>, vector<128x128xbf16>
    %166 = arith.truncf %3 : vector<16x128xf32> to vector<16x128xbf16>
    %cst_63 = arith.constant dense<0.000000e+00> : vector<16x128xf32>
    %167 = tpu.matmul %166, %165, %cst_63 {dimension_numbers = #tpu.dot_dimension_numbers<[1], [0], [0], [1], [0, 0, 1, 1], [], []>} : vector<16x128xbf16>, vector<128x128xbf16>, vector<16x128xf32> -> vector<16x128xf32>
    %c0_64 = arith.constant 0 : index
    %c0_65 = arith.constant 0 : index
    %168 = vector.load %arg14[%c0_64, %c0_65] : memref<1x128xf32, #tpu.memory_space<vmem>>, vector<1x128xf32>
    %169 = vector.broadcast %168 : vector<1x128xf32> to vector<16x128xf32>
    %170 = arith.addf %167, %169 : vector<16x128xf32>
    %c0_66 = arith.constant 0 : index
    %c0_67 = arith.constant 0 : index
    %171 = vector.load %arg15[%c0_66, %c0_67] : memref<128x128xbf16, #tpu.memory_space<vmem>>, vector<128x128xbf16>
    %cst_68 = arith.constant 0.176776692 : f32
    %172 = vector.broadcast %cst_68 : f32 to vector<16x128xf32>
    %173 = arith.mulf %170, %172 : vector<16x128xf32>
    %174 = arith.truncf %173 : vector<16x128xf32> to vector<16x128xbf16>
    %175 = arith.truncf %163 : vector<16x128xf32> to vector<16x128xbf16>
    %176 = arith.truncf %164 : vector<16x128xf32> to vector<16x128xbf16>
    %177 = vector.extract_strided_slice %174 {offsets = [0, 0], sizes = [16, 32], strides = [1, 1]} : vector<16x128xbf16> to vector<16x32xbf16>
    %178 = vector.extract_strided_slice %175 {offsets = [0, 0], sizes = [16, 32], strides = [1, 1]} : vector<16x128xbf16> to vector<16x32xbf16>
    %cst_69 = arith.constant dense<0.000000e+00> : vector<16x16xf32>
    %179 = tpu.matmul %177, %178, %cst_69 {dimension_numbers = #tpu.dot_dimension_numbers<[1], [1], [0], [0], [0, 0, 1, 0], [], []>} : vector<16x32xbf16>, vector<16x32xbf16>, vector<16x16xf32> -> vector<16x16xf32>
    %cst_70 = arith.constant dense<0xFF800000> : vector<16xf32>
    %180 = vector.multi_reduction <maximumf>, %179, %cst_70 [1] : vector<16x16xf32> to vector<16xf32>
    %181 = vector.shape_cast %180 : vector<16xf32> to vector<16x1xf32>
    %182 = vector.broadcast %181 : vector<16x1xf32> to vector<16x16xf32>
    %183 = arith.subf %179, %182 : vector<16x16xf32>
    %184 = math.exp %183 : vector<16x16xf32>
    %cst_71 = arith.constant dense<0.000000e+00> : vector<16xf32>
    %185 = vector.multi_reduction <add>, %184, %cst_71 [1] : vector<16x16xf32> to vector<16xf32>
    %186 = vector.shape_cast %185 : vector<16xf32> to vector<16x1xf32>
    %187 = tpu.reciprocal %186 {approx = true} : vector<16x1xf32> -> vector<16x1xf32>
    %188 = vector.broadcast %187 : vector<16x1xf32> to vector<16x16xf32>
    %189 = arith.mulf %184, %188 : vector<16x16xf32>
    %190 = arith.truncf %189 : vector<16x16xf32> to vector<16x16xbf16>
    %191 = vector.extract_strided_slice %176 {offsets = [0, 0], sizes = [16, 32], strides = [1, 1]} : vector<16x128xbf16> to vector<16x32xbf16>
    %cst_72 = arith.constant dense<0.000000e+00> : vector<16x32xf32>
    %192 = tpu.matmul %190, %191, %cst_72 {dimension_numbers = #tpu.dot_dimension_numbers<[1], [0], [0], [1], [0, 0, 1, 1], [], []>} : vector<16x16xbf16>, vector<16x32xbf16>, vector<16x32xf32> -> vector<16x32xf32>
    %193 = arith.truncf %192 : vector<16x32xf32> to vector<16x32xbf16>
    %194 = vector.extract_strided_slice %171 {offsets = [0, 0], sizes = [32, 128], strides = [1, 1]} : vector<128x128xbf16> to vector<32x128xbf16>
    %cst_73 = arith.constant dense<0.000000e+00> : vector<16x128xf32>
    %195 = tpu.matmul %193, %194, %cst_73 {dimension_numbers = #tpu.dot_dimension_numbers<[1], [0], [0], [1], [0, 0, 1, 1], [], []>} : vector<16x32xbf16>, vector<32x128xbf16>, vector<16x128xf32> -> vector<16x128xf32>
    %196 = vector.extract_strided_slice %174 {offsets = [0, 32], sizes = [16, 32], strides = [1, 1]} : vector<16x128xbf16> to vector<16x32xbf16>
    %197 = vector.extract_strided_slice %175 {offsets = [0, 32], sizes = [16, 32], strides = [1, 1]} : vector<16x128xbf16> to vector<16x32xbf16>
    %cst_74 = arith.constant dense<0.000000e+00> : vector<16x16xf32>
    %198 = tpu.matmul %196, %197, %cst_74 {dimension_numbers = #tpu.dot_dimension_numbers<[1], [1], [0], [0], [0, 0, 1, 0], [], []>} : vector<16x32xbf16>, vector<16x32xbf16>, vector<16x16xf32> -> vector<16x16xf32>
    %cst_75 = arith.constant dense<0xFF800000> : vector<16xf32>
    %199 = vector.multi_reduction <maximumf>, %198, %cst_75 [1] : vector<16x16xf32> to vector<16xf32>
    %200 = vector.shape_cast %199 : vector<16xf32> to vector<16x1xf32>
    %201 = vector.broadcast %200 : vector<16x1xf32> to vector<16x16xf32>
    %202 = arith.subf %198, %201 : vector<16x16xf32>
    %203 = math.exp %202 : vector<16x16xf32>
    %cst_76 = arith.constant dense<0.000000e+00> : vector<16xf32>
    %204 = vector.multi_reduction <add>, %203, %cst_76 [1] : vector<16x16xf32> to vector<16xf32>
    %205 = vector.shape_cast %204 : vector<16xf32> to vector<16x1xf32>
    %206 = tpu.reciprocal %205 {approx = true} : vector<16x1xf32> -> vector<16x1xf32>
    %207 = vector.broadcast %206 : vector<16x1xf32> to vector<16x16xf32>
    %208 = arith.mulf %203, %207 : vector<16x16xf32>
    %209 = arith.truncf %208 : vector<16x16xf32> to vector<16x16xbf16>
    %210 = vector.extract_strided_slice %176 {offsets = [0, 32], sizes = [16, 32], strides = [1, 1]} : vector<16x128xbf16> to vector<16x32xbf16>
    %cst_77 = arith.constant dense<0.000000e+00> : vector<16x32xf32>
    %211 = tpu.matmul %209, %210, %cst_77 {dimension_numbers = #tpu.dot_dimension_numbers<[1], [0], [0], [1], [0, 0, 1, 1], [], []>} : vector<16x16xbf16>, vector<16x32xbf16>, vector<16x32xf32> -> vector<16x32xf32>
    %212 = arith.truncf %211 : vector<16x32xf32> to vector<16x32xbf16>
    %213 = vector.extract_strided_slice %171 {offsets = [32, 0], sizes = [32, 128], strides = [1, 1]} : vector<128x128xbf16> to vector<32x128xbf16>
    %cst_78 = arith.constant dense<0.000000e+00> : vector<16x128xf32>
    %214 = tpu.matmul %212, %213, %cst_78 {dimension_numbers = #tpu.dot_dimension_numbers<[1], [0], [0], [1], [0, 0, 1, 1], [], []>} : vector<16x32xbf16>, vector<32x128xbf16>, vector<16x128xf32> -> vector<16x128xf32>
    %215 = arith.addf %195, %214 : vector<16x128xf32>
    %216 = vector.extract_strided_slice %174 {offsets = [0, 64], sizes = [16, 32], strides = [1, 1]} : vector<16x128xbf16> to vector<16x32xbf16>
    %217 = vector.extract_strided_slice %175 {offsets = [0, 64], sizes = [16, 32], strides = [1, 1]} : vector<16x128xbf16> to vector<16x32xbf16>
    %cst_79 = arith.constant dense<0.000000e+00> : vector<16x16xf32>
    %218 = tpu.matmul %216, %217, %cst_79 {dimension_numbers = #tpu.dot_dimension_numbers<[1], [1], [0], [0], [0, 0, 1, 0], [], []>} : vector<16x32xbf16>, vector<16x32xbf16>, vector<16x16xf32> -> vector<16x16xf32>
    %cst_80 = arith.constant dense<0xFF800000> : vector<16xf32>
    %219 = vector.multi_reduction <maximumf>, %218, %cst_80 [1] : vector<16x16xf32> to vector<16xf32>
    %220 = vector.shape_cast %219 : vector<16xf32> to vector<16x1xf32>
    %221 = vector.broadcast %220 : vector<16x1xf32> to vector<16x16xf32>
    %222 = arith.subf %218, %221 : vector<16x16xf32>
    %223 = math.exp %222 : vector<16x16xf32>
    %cst_81 = arith.constant dense<0.000000e+00> : vector<16xf32>
    %224 = vector.multi_reduction <add>, %223, %cst_81 [1] : vector<16x16xf32> to vector<16xf32>
    %225 = vector.shape_cast %224 : vector<16xf32> to vector<16x1xf32>
    %226 = tpu.reciprocal %225 {approx = true} : vector<16x1xf32> -> vector<16x1xf32>
    %227 = vector.broadcast %226 : vector<16x1xf32> to vector<16x16xf32>
    %228 = arith.mulf %223, %227 : vector<16x16xf32>
    %229 = arith.truncf %228 : vector<16x16xf32> to vector<16x16xbf16>
    %230 = vector.extract_strided_slice %176 {offsets = [0, 64], sizes = [16, 32], strides = [1, 1]} : vector<16x128xbf16> to vector<16x32xbf16>
    %cst_82 = arith.constant dense<0.000000e+00> : vector<16x32xf32>
    %231 = tpu.matmul %229, %230, %cst_82 {dimension_numbers = #tpu.dot_dimension_numbers<[1], [0], [0], [1], [0, 0, 1, 1], [], []>} : vector<16x16xbf16>, vector<16x32xbf16>, vector<16x32xf32> -> vector<16x32xf32>
    %232 = arith.truncf %231 : vector<16x32xf32> to vector<16x32xbf16>
    %233 = vector.extract_strided_slice %171 {offsets = [64, 0], sizes = [32, 128], strides = [1, 1]} : vector<128x128xbf16> to vector<32x128xbf16>
    %cst_83 = arith.constant dense<0.000000e+00> : vector<16x128xf32>
    %234 = tpu.matmul %232, %233, %cst_83 {dimension_numbers = #tpu.dot_dimension_numbers<[1], [0], [0], [1], [0, 0, 1, 1], [], []>} : vector<16x32xbf16>, vector<32x128xbf16>, vector<16x128xf32> -> vector<16x128xf32>
    %235 = arith.addf %215, %234 : vector<16x128xf32>
    %236 = vector.extract_strided_slice %174 {offsets = [0, 96], sizes = [16, 32], strides = [1, 1]} : vector<16x128xbf16> to vector<16x32xbf16>
    %237 = vector.extract_strided_slice %175 {offsets = [0, 96], sizes = [16, 32], strides = [1, 1]} : vector<16x128xbf16> to vector<16x32xbf16>
    %cst_84 = arith.constant dense<0.000000e+00> : vector<16x16xf32>
    %238 = tpu.matmul %236, %237, %cst_84 {dimension_numbers = #tpu.dot_dimension_numbers<[1], [1], [0], [0], [0, 0, 1, 0], [], []>} : vector<16x32xbf16>, vector<16x32xbf16>, vector<16x16xf32> -> vector<16x16xf32>
    %cst_85 = arith.constant dense<0xFF800000> : vector<16xf32>
    %239 = vector.multi_reduction <maximumf>, %238, %cst_85 [1] : vector<16x16xf32> to vector<16xf32>
    %240 = vector.shape_cast %239 : vector<16xf32> to vector<16x1xf32>
    %241 = vector.broadcast %240 : vector<16x1xf32> to vector<16x16xf32>
    %242 = arith.subf %238, %241 : vector<16x16xf32>
    %243 = math.exp %242 : vector<16x16xf32>
    %cst_86 = arith.constant dense<0.000000e+00> : vector<16xf32>
    %244 = vector.multi_reduction <add>, %243, %cst_86 [1] : vector<16x16xf32> to vector<16xf32>
    %245 = vector.shape_cast %244 : vector<16xf32> to vector<16x1xf32>
    %246 = tpu.reciprocal %245 {approx = true} : vector<16x1xf32> -> vector<16x1xf32>
    %247 = vector.broadcast %246 : vector<16x1xf32> to vector<16x16xf32>
    %248 = arith.mulf %243, %247 : vector<16x16xf32>
    %249 = arith.truncf %248 : vector<16x16xf32> to vector<16x16xbf16>
    %250 = vector.extract_strided_slice %176 {offsets = [0, 96], sizes = [16, 32], strides = [1, 1]} : vector<16x128xbf16> to vector<16x32xbf16>
    %cst_87 = arith.constant dense<0.000000e+00> : vector<16x32xf32>
    %251 = tpu.matmul %249, %250, %cst_87 {dimension_numbers = #tpu.dot_dimension_numbers<[1], [0], [0], [1], [0, 0, 1, 1], [], []>} : vector<16x16xbf16>, vector<16x32xbf16>, vector<16x32xf32> -> vector<16x32xf32>
    %252 = arith.truncf %251 : vector<16x32xf32> to vector<16x32xbf16>
    %253 = vector.extract_strided_slice %171 {offsets = [96, 0], sizes = [32, 128], strides = [1, 1]} : vector<128x128xbf16> to vector<32x128xbf16>
    %cst_88 = arith.constant dense<0.000000e+00> : vector<16x128xf32>
    %254 = tpu.matmul %252, %253, %cst_88 {dimension_numbers = #tpu.dot_dimension_numbers<[1], [0], [0], [1], [0, 0, 1, 1], [], []>} : vector<16x32xbf16>, vector<32x128xbf16>, vector<16x128xf32> -> vector<16x128xf32>
    %255 = arith.addf %235, %254 : vector<16x128xf32>
    %256 = arith.addf %134, %255 : vector<16x128xf32>
    %c0_89 = arith.constant 0 : index
    %c0_90 = arith.constant 0 : index
    %257 = vector.load %arg16[%c0_89, %c0_90] : memref<1x128xf32, #tpu.memory_space<vmem>>, vector<1x128xf32>
    %258 = vector.broadcast %257 : vector<1x128xf32> to vector<16x128xf32>
    %259 = arith.addf %256, %258 : vector<16x128xf32>
    %c0_91 = arith.constant 0 : index
    %c0_92 = arith.constant 0 : index
    %c0_93 = arith.constant 0 : index
    %260 = vector.load %arg17[%c0_91, %c0_92, %c0_93] : memref<1x16x128xf32, #tpu.memory_space<vmem>>, vector<1x16x128xf32>
    %261 = vector.shape_cast %260 : vector<1x16x128xf32> to vector<16x128xf32>
    %262 = vector.shape_cast %259 : vector<16x128xf32> to vector<1x16x128xf32>
    tpu.vector_store %arg17[%c0_91, %c0_92, %c0_93], %262 {strides = array<i32>} : memref<1x16x128xf32, #tpu.memory_space<vmem>>, vector<1x16x128xf32>,
    return
  }
  func.func @transform_0(%arg0: i32) -> (i32, i32, i32) {
    %c0_i32 = arith.constant 0 : i32
    %c0_i32_0 = arith.constant 0 : i32
    %c0_i32_1 = arith.constant 0 : i32
    return %arg0, %c0_i32, %c0_i32_0 : i32, i32, i32
  }
  func.func @transform_1(%arg0: i32) -> (i32, i32, i32) {
    %c0_i32 = arith.constant 0 : i32
    %c0_i32_0 = arith.constant 0 : i32
    %c0_i32_1 = arith.constant 0 : i32
    return %arg0, %c0_i32, %c0_i32_0 : i32, i32, i32
  }
  func.func @transform_2(%arg0: i32) -> (i32, i32) {
    %c0_i32 = arith.constant 0 : i32
    %c0_i32_0 = arith.constant 0 : i32
    %c0_i32_1 = arith.constant 0 : i32
    return %c0_i32, %c0_i32_0 : i32, i32
  }
  func.func @transform_3(%arg0: i32) -> (i32, i32) {
    %c0_i32 = arith.constant 0 : i32
    %c0_i32_0 = arith.constant 0 : i32
    %c0_i32_1 = arith.constant 0 : i32
    return %c0_i32, %c0_i32_0 : i32, i32
  }
  func.func @transform_4(%arg0: i32) -> (i32, i32) {
    %c0_i32 = arith.constant 0 : i32
    %c0_i32_0 = arith.constant 0 : i32
    %c0_i32_1 = arith.constant 0 : i32
    return %c0_i32, %c0_i32_0 : i32, i32
  }
  func.func @transform_5(%arg0: i32) -> (i32, i32) {
    %c0_i32 = arith.constant 0 : i32
    %c0_i32_0 = arith.constant 0 : i32
    %c0_i32_1 = arith.constant 0 : i32
    return %c0_i32, %c0_i32_0 : i32, i32
  }
  func.func @transform_6(%arg0: i32) -> (i32, i32) {
    %c0_i32 = arith.constant 0 : i32
    %c0_i32_0 = arith.constant 0 : i32
    %c0_i32_1 = arith.constant 0 : i32
    return %c0_i32, %c0_i32_0 : i32, i32
  }
  func.func @transform_7(%arg0: i32) -> (i32, i32) {
    %c0_i32 = arith.constant 0 : i32
    %c0_i32_0 = arith.constant 0 : i32
    %c0_i32_1 = arith.constant 0 : i32
    return %c0_i32, %c0_i32_0 : i32, i32
  }
  func.func @transform_8(%arg0: i32) -> (i32, i32) {
    %c0_i32 = arith.constant 0 : i32
    %c0_i32_0 = arith.constant 0 : i32
    %c0_i32_1 = arith.constant 0 : i32
    return %c0_i32, %c0_i32_0 : i32, i32
  }
  func.func @transform_9(%arg0: i32) -> (i32, i32) {
    %c0_i32 = arith.constant 0 : i32
    %c0_i32_0 = arith.constant 0 : i32
    %c0_i32_1 = arith.constant 0 : i32
    return %c0_i32, %c0_i32_0 : i32, i32
  }
  func.func @transform_10(%arg0: i32) -> (i32, i32) {
    %c0_i32 = arith.constant 0 : i32
    %c0_i32_0 = arith.constant 0 : i32
    %c0_i32_1 = arith.constant 0 : i32
    return %c0_i32, %c0_i32_0 : i32, i32
  }
  func.func @transform_11(%arg0: i32) -> (i32, i32) {
    %c0_i32 = arith.constant 0 : i32
    %c0_i32_0 = arith.constant 0 : i32
    %c0_i32_1 = arith.constant 0 : i32
    return %c0_i32, %c0_i32_0 : i32, i32
  }
  func.func @transform_12(%arg0: i32) -> (i32, i32) {
    %c0_i32 = arith.constant 0 : i32
    %c0_i32_0 = arith.constant 0 : i32
    %c0_i32_1 = arith.constant 0 : i32
    return %c0_i32, %c0_i32_0 : i32, i32
  }
  func.func @transform_13(%arg0: i32) -> (i32, i32) {
    %c0_i32 = arith.constant 0 : i32
    %c0_i32_0 = arith.constant 0 : i32
    %c0_i32_1 = arith.constant 0 : i32
    return %c0_i32, %c0_i32_0 : i32, i32
  }
  func.func @transform_14(%arg0: i32) -> (i32, i32) {
    %c0_i32 = arith.constant 0 : i32
    %c0_i32_0 = arith.constant 0 : i32
    %c0_i32_1 = arith.constant 0 : i32
    return %c0_i32, %c0_i32_0 : i32, i32
  }
  func.func @transform_15(%arg0: i32) -> (i32, i32) {
    %c0_i32 = arith.constant 0 : i32
    %c0_i32_0 = arith.constant 0 : i32
    %c0_i32_1 = arith.constant 0 : i32
    return %c0_i32, %c0_i32_0 : i32, i32
  }
  func.func @transform_16(%arg0: i32) -> (i32, i32, i32) {
    %c0_i32 = arith.constant 0 : i32
    %c0_i32_0 = arith.constant 0 : i32
    %c0_i32_1 = arith.constant 0 : i32
    return %arg0, %c0_i32, %c0_i32_0 : i32, i32, i32
  }
}

</mosaic_0001>

<llo_original>
// kernel: tpu_custom_call.1
$region0: #{tpu_custom_call.1}
  #allocation0 [shape = 'u32[]', space=smem, size = 0x4, offset = 0x4, fixed_abs, tag = 'smem constant byte address 0x4 - core index']
  #allocation1 [shape = 'u32[72,128]{1,0:T(1,128)}', space=vmem, size = 0x9000, scoped, tag = 'internal scratch']
  %s0 = inlined_call_operand.hbm [shape: f32[2,16,128], index: 0, kind: input, shape index: {}]
  %s1 = inlined_call_operand.hbm [shape: f32[2,16,128], index: 1, kind: input, shape index: {}]
  %s2 = inlined_call_operand.hbm [shape: f32[1,128], index: 2, kind: input, shape index: {}]
  %s3 = inlined_call_operand.hbm [shape: f32[1,128], index: 3, kind: input, shape index: {}]
  %s4 = inlined_call_operand.hbm [shape: f32[1,128], index: 4, kind: input, shape index: {}]
  %s5 = inlined_call_operand.hbm [shape: f32[1,128], index: 5, kind: input, shape index: {}]
  %s6 = inlined_call_operand.hbm [shape: bf16[128,384], index: 6, kind: input, shape index: {}]
  %s7 = inlined_call_operand.vmem [shape: f32[1,384], index: 7, kind: input, shape index: {}]
  %s8 = inlined_call_operand.hbm [shape: bf16[128,128], index: 8, kind: input, shape index: {}]
  %s9 = inlined_call_operand.vmem [shape: f32[1,128], index: 9, kind: input, shape index: {}]
  %s10 = inlined_call_operand.hbm [shape: bf16[128,256], index: 10, kind: input, shape index: {}]
  %s11 = inlined_call_operand.vmem [shape: f32[1,256], index: 11, kind: input, shape index: {}]
  %s12 = inlined_call_operand.hbm [shape: bf16[128,128], index: 12, kind: input, shape index: {}]
  %s13 = inlined_call_operand.vmem [shape: f32[1,128], index: 13, kind: input, shape index: {}]
  %s14 = inlined_call_operand.hbm [shape: bf16[128,128], index: 14, kind: input, shape index: {}]
  %s15 = inlined_call_operand.vmem [shape: f32[1,128], index: 15, kind: input, shape index: {}]
  %s16 = inlined_call_operand.hbm [shape: f32[2,16,128], index: 16, kind: output, shape index: {}]
  %s17 = sld [smem:[#allocation0]]
  $region141: #{tpu_custom_call.1} parent=0
    _
  %s19 = ssub.s32 1, %s17
  %s20 = scalar_select 0, %s19, %s17
  $region1: #{tpu_custom_call.1} parent=0
    #allocation2 [shape = 'u8[16384]{0}', space=vmem, size = 0x4000, scoped, tag = 'input window, operand 0']
    #allocation3 [shape = 's32[2]{0}', space=sflag, size = 0x8, scoped, tag = 'scoped memory for tpu_custom_call.1']
    #allocation4 [shape = 's32[2]{0}', space=sflag, size = 0x8, scoped, tag = 'scoped memory for tpu_custom_call.1']
    #allocation5 [shape = 'u8[16384]{0}', space=vmem, size = 0x4000, scoped, tag = 'input window, operand 1']
    #allocation6 [shape = 's32[2]{0}', space=sflag, size = 0x8, scoped, tag = 'scoped memory for tpu_custom_call.1']
    #allocation7 [shape = 'u8[512]{0}', space=vmem, size = 0x400, scoped, tag = 'input window, operand 2, single buffered']
    #allocation8 [shape = 'u8[512]{0}', space=vmem, size = 0x400, scoped, tag = 'input window, operand 3, single buffered']
    #allocation9 [shape = 's32[1]{0}', space=sflag, size = 0x4, scoped, tag = 'scoped memory for tpu_custom_call.1']
    #allocation10 [shape = 'u8[512]{0}', space=vmem, size = 0x400, scoped, tag = 'input window, operand 4, single buffered']
    #allocation11 [shape = 'u8[512]{0}', space=vmem, size = 0x400, scoped, tag = 'input window, operand 5, single buffered']
    #allocation12 [shape = 's32[1]{0}', space=sflag, size = 0x4, scoped, tag = 'scoped memory for tpu_custom_call.1']
    #allocation13 [shape = 'u8[98304]{0}', space=vmem, size = 0x18000, scoped, tag = 'input window, operand 6, single buffered']
    #allocation14 [shape = 'u8[32768]{0}', space=vmem, size = 0x8000, scoped, tag = 'input window, operand 8, single buffered']
    #allocation15 [shape = 's32[1]{0}', space=sflag, size = 0x4, scoped, tag = 'scoped memory for tpu_custom_call.1']
    #allocation16 [shape = 'u8[65536]{0}', space=vmem, size = 0x10000, scoped, tag = 'input window, operand 10, single buffered']
    #allocation17 [shape = 'u8[32768]{0}', space=vmem, size = 0x8000, scoped, tag = 'input window, operand 12, single buffered']
    #allocation18 [shape = 's32[1]{0}', space=sflag, size = 0x4, scoped, tag = 'scoped memory for tpu_custom_call.1']
    #allocation19 [shape = 'u8[32768]{0}', space=vmem, size = 0x8000, scoped, tag = 'input window, operand 14, single buffered']
    #allocation20 [shape = 'u8[16384]{0}', space=vmem, size = 0x4000, scoped, tag = 'output window, operand 0']
    %21 = vsyncpa [#allocation3], 0
    %s22 = scalar_lea.sflag [#allocation3], 1
    %23 = vsyncpa %s22, 0
    %24 = vsyncpa [#allocation6], 0
    %s25 = scalar_lea.sflag [#allocation6], 1
    %26 = vsyncpa %s25, 0
    %27 = vsyncpa [#allocation9], 0
    %28 = vsyncpa [#allocation12], 0
    %29 = vsyncpa [#allocation15], 0
    %30 = vsyncpa [#allocation18], 0
    %31 = vsyncpa [#allocation4], 0
    %s32 = scalar_lea.sflag [#allocation4], 1
    %33 = vsyncpa %s32, 0
    loop: start=0, step=1, limit=4
    $region2: #{tpu_custom_call.1} parent=1 // loop_pre_header
      _
    $region3: #{tpu_custom_call.1} parent=1 // loop_header
      %s35 = sphi 0, %s39
      %p36 = scmp.ge.s32.totalorder %s35, 4
      %s45 = sphi 0, %s47
      %s48 = sphi 0, %s45
      %s49 = sphi 0, %s48
      %s65 = sphi 0, %s49
      %s71 = sphi 0, %s73
      %s74 = sphi 0, %s71
      %s75 = sphi 0, %s74
      %s91 = sphi 0, %s75
      %s95 = sphi 0, %s95
      %s97 = sphi 0, %s95
      %s98 = sphi 0, %s97
      %s112 = sphi 0, %s98
      %s116 = sphi 0, %s116
      %s118 = sphi 0, %s116
      %s119 = sphi 0, %s118
      %s133 = sphi 0, %s119
      %s137 = sphi 0, %s137
      %s139 = sphi 0, %s137
      %s140 = sphi 0, %s139
      %s154 = sphi 0, %s140
      %s158 = sphi 0, %s158
      %s160 = sphi 0, %s158
      %s161 = sphi 0, %s160
      %s175 = sphi 0, %s161
      %s179 = sphi 0, %s179
      %s181 = sphi 0, %s179
      %s182 = sphi 0, %s181
      %s196 = sphi 0, %s182
      %s200 = sphi 0, %s200
      %s202 = sphi 0, %s200
      %s203 = sphi 0, %s202
      %s217 = sphi 0, %s203
      %s221 = sphi 0, %s221
      %s223 = sphi 0, %s221
      %s224 = sphi 0, %s223
      %s238 = sphi 0, %s224
      %s242 = sphi 0, %s242
      %s244 = sphi 0, %s242
      %s245 = sphi 0, %s244
      %s259 = sphi 0, %s245
      %s263 = sphi 0, %s263
      %s265 = sphi 0, %s263
      %s266 = sphi 0, %s265
      %s280 = sphi 0, %s266
      %s284 = sphi 0, %s284
      %s286 = sphi 0, %s284
      %s287 = sphi 0, %s286
      %s301 = sphi 0, %s287
      %s305 = sphi 0, %s305
      %s307 = sphi 0, %s305
      %s308 = sphi 0, %s307
      %s322 = sphi 0, %s308
      %s326 = sphi 0, %s326
      %s328 = sphi 0, %s326
      %s329 = sphi 0, %s328
      %s343 = sphi 0, %s329
      %s347 = sphi 0, %s347
      %s349 = sphi 0, %s347
      %s350 = sphi 0, %s349
      %s364 = sphi 0, %s350
      %s368 = sphi 0, %s368
      %s370 = sphi 0, %s368
      %s371 = sphi 0, %s370
      %s385 = sphi 0, %s371
      %s391 = sphi 0, %s393
      %s394 = sphi 0, %s391
      %s395 = sphi 0, %s394
      %s411 = sphi 0, %s395
    $region4: #{tpu_custom_call.1} parent=1 // loop_header_branch
      %38 = sbr.rel (%p36) target = $region8
    $region5: #{tpu_custom_call.1} parent=1 // loop_body
      %s40 = ssub.s32 %s35, 1
      %s41 = ssub.s32 %s35, 2
      %s42 = sadd.s32 %s35, 1
      %s43 = ssub.s32 %s35, %s42
      %p44 = scmp.eq.s32.totalorder %s43, 0
      %s46 = sadd.s32 %s45, 1
      %s47 = scalar_select %p44, %s45, %s46
      %p50 = pneg %p44
      %p51 = scmp.eq.s32.totalorder %s35, 1
      %p52 = por %p50, %p51
      %p53 = scmp.ne.s32.totalorder %s45, %s48
      %p54 = scmp.eq.s32.totalorder %s35, 0
      %p55 = por %p53, %p54
      %p56 = scmp.ne.s32.totalorder %s45, %s48
      %p57 = scmp.eq.s32.totalorder %s40, 1
      %p58 = por %p56, %p57
      %p59 = scmp.ne.s32.totalorder %s48, %s49
      %p60 = scmp.eq.s32.totalorder %s40, 0
      %p61 = por %p59, %p60
      %p62 = scmp.ne.s32.totalorder %s48, %s49
      %p63 = scmp.eq.s32.totalorder %s41, 1
      %p64 = por %p62, %p63
      %p66 = scmp.ne.s32.totalorder %s49, %s65
      %p67 = scmp.eq.s32.totalorder %s41, 0
      %p68 = por %p66, %p67
      %s69 = ssub.s32 %s35, %s42
      %p70 = scmp.eq.s32.totalorder %s69, 0
      %s72 = sadd.s32 %s71, 1
      %s73 = scalar_select %p70, %s71, %s72
      %p76 = pneg %p70
      %p77 = scmp.eq.s32.totalorder %s35, 1
      %p78 = por %p76, %p77
      %p79 = scmp.ne.s32.totalorder %s71, %s74
      %p80 = scmp.eq.s32.totalorder %s35, 0
      %p81 = por %p79, %p80
      %p82 = scmp.ne.s32.totalorder %s71, %s74
      %p83 = scmp.eq.s32.totalorder %s40, 1
      %p84 = por %p82, %p83
      %p85 = scmp.ne.s32.totalorder %s74, %s75
      %p86 = scmp.eq.s32.totalorder %s40, 0
      %p87 = por %p85, %p86
      %p88 = scmp.ne.s32.totalorder %s74, %s75
      %p89 = scmp.eq.s32.totalorder %s41, 1
      %p90 = por %p88, %p89
      %p92 = scmp.ne.s32.totalorder %s75, %s91
      %p93 = scmp.eq.s32.totalorder %s41, 0
      %p94 = por %p92, %p93
      %s96 = sadd.s32 %s95, 1
      %p99 = scmp.eq.s32.totalorder %s35, 1
      %p100 = scmp.ne.s32.totalorder %s95, %s97
      %p101 = scmp.eq.s32.totalorder %s35, 0
      %p102 = por %p100, %p101
      %p103 = scmp.ne.s32.totalorder %s95, %s97
      %p104 = scmp.eq.s32.totalorder %s40, 1
      %p105 = por %p103, %p104
      %p106 = scmp.ne.s32.totalorder %s97, %s98
      %p107 = scmp.eq.s32.totalorder %s40, 0
      %p108 = por %p106, %p107
      %p109 = scmp.ne.s32.totalorder %s97, %s98
      %p110 = scmp.eq.s32.totalorder %s41, 1
      %p111 = por %p109, %p110
      %p113 = scmp.ne.s32.totalorder %s98, %s112
      %p114 = scmp.eq.s32.totalorder %s41, 0
      %p115 = por %p113, %p114
      %s117 = sadd.s32 %s116, 1
      %p120 = scmp.eq.s32.totalorder %s35, 1
      %p121 = scmp.ne.s32.totalorder %s116, %s118
      %p122 = scmp.eq.s32.totalorder %s35, 0
      %p123 = por %p121, %p122
      %p124 = scmp.ne.s32.totalorder %s116, %s118
      %p125 = scmp.eq.s32.totalorder %s40, 1
      %p126 = por %p124, %p125
      %p127 = scmp.ne.s32.totalorder %s118, %s119
      %p128 = scmp.eq.s32.totalorder %s40, 0
      %p129 = por %p127, %p128
      %p130 = scmp.ne.s32.totalorder %s118, %s119
      %p131 = scmp.eq.s32.totalorder %s41, 1
      %p132 = por %p130, %p131
      %p134 = scmp.ne.s32.totalorder %s119, %s133
      %p135 = scmp.eq.s32.totalorder %s41, 0
      %p136 = por %p134, %p135
      %s138 = sadd.s32 %s137, 1
      %p141 = scmp.eq.s32.totalorder %s35, 1
      %p142 = scmp.ne.s32.totalorder %s137, %s139
      %p143 = scmp.eq.s32.totalorder %s35, 0
      %p144 = por %p142, %p143
      %p145 = scmp.ne.s32.totalorder %s137, %s139
      %p146 = scmp.eq.s32.totalorder %s40, 1
      %p147 = por %p145, %p146
      %p148 = scmp.ne.s32.totalorder %s139, %s140
      %p149 = scmp.eq.s32.totalorder %s40, 0
      %p150 = por %p148, %p149
      %p151 = scmp.ne.s32.totalorder %s139, %s140
      %p152 = scmp.eq.s32.totalorder %s41, 1
      %p153 = por %p151, %p152
      %p155 = scmp.ne.s32.totalorder %s140, %s154
      %p156 = scmp.eq.s32.totalorder %s41, 0
      %p157 = por %p155, %p156
      %s159 = sadd.s32 %s158, 1
      %p162 = scmp.eq.s32.totalorder %s35, 1
      %p163 = scmp.ne.s32.totalorder %s158, %s160
      %p164 = scmp.eq.s32.totalorder %s35, 0
      %p165 = por %p163, %p164
      %p166 = scmp.ne.s32.totalorder %s158, %s160
      %p167 = scmp.eq.s32.totalorder %s40, 1
      %p168 = por %p166, %p167
      %p169 = scmp.ne.s32.totalorder %s160, %s161
      %p170 = scmp.eq.s32.totalorder %s40, 0
      %p171 = por %p169, %p170
      %p172 = scmp.ne.s32.totalorder %s160, %s161
      %p173 = scmp.eq.s32.totalorder %s41, 1
      %p174 = por %p172, %p173
      %p176 = scmp.ne.s32.totalorder %s161, %s175
      %p177 = scmp.eq.s32.totalorder %s41, 0
      %p178 = por %p176, %p177
      %s180 = sadd.s32 %s179, 1
      %p183 = scmp.eq.s32.totalorder %s35, 1
      %p184 = scmp.ne.s32.totalorder %s179, %s181
      %p185 = scmp.eq.s32.totalorder %s35, 0
      %p186 = por %p184, %p185
      %p187 = scmp.ne.s32.totalorder %s179, %s181
      %p188 = scmp.eq.s32.totalorder %s40, 1
      %p189 = por %p187, %p188
      %p190 = scmp.ne.s32.totalorder %s181, %s182
      %p191 = scmp.eq.s32.totalorder %s40, 0
      %p192 = por %p190, %p191
      %p193 = scmp.ne.s32.totalorder %s181, %s182
      %p194 = scmp.eq.s32.totalorder %s41, 1
      %p195 = por %p193, %p194
      %p197 = scmp.ne.s32.totalorder %s182, %s196
      %p198 = scmp.eq.s32.totalorder %s41, 0
      %p199 = por %p197, %p198
      %s201 = sadd.s32 %s200, 1
      %p204 = scmp.eq.s32.totalorder %s35, 1
      %p205 = scmp.ne.s32.totalorder %s200, %s202
      %p206 = scmp.eq.s32.totalorder %s35, 0
      %p207 = por %p205, %p206
      %p208 = scmp.ne.s32.totalorder %s200, %s202
      %p209 = scmp.eq.s32.totalorder %s40, 1
      %p210 = por %p208, %p209
      %p211 = scmp.ne.s32.totalorder %s202, %s203
      %p212 = scmp.eq.s32.totalorder %s40, 0
      %p213 = por %p211, %p212
      %p214 = scmp.ne.s32.totalorder %s202, %s203
      %p215 = scmp.eq.s32.totalorder %s41, 1
      %p216 = por %p214, %p215
      %p218 = scmp.ne.s32.totalorder %s203, %s217
      %p219 = scmp.eq.s32.totalorder %s41, 0
      %p220 = por %p218, %p219
      %s222 = sadd.s32 %s221, 1
      %p225 = scmp.eq.s32.totalorder %s35, 1
      %p226 = scmp.ne.s32.totalorder %s221, %s223
      %p227 = scmp.eq.s32.totalorder %s35, 0
      %p228 = por %p226, %p227
      %p229 = scmp.ne.s32.totalorder %s221, %s223
      %p230 = scmp.eq.s32.totalorder %s40, 1
      %p231 = por %p229, %p230
      %p232 = scmp.ne.s32.totalorder %s223, %s224
      %p233 = scmp.eq.s32.totalorder %s40, 0
      %p234 = por %p232, %p233
      %p235 = scmp.ne.s32.totalorder %s223, %s224
      %p236 = scmp.eq.s32.totalorder %s41, 1
      %p237 = por %p235, %p236
      %p239 = scmp.ne.s32.totalorder %s224, %s238
      %p240 = scmp.eq.s32.totalorder %s41, 0
      %p241 = por %p239, %p240
      %s243 = sadd.s32 %s242, 1
      %p246 = scmp.eq.s32.totalorder %s35, 1
      %p247 = scmp.ne.s32.totalorder %s242, %s244
      %p248 = scmp.eq.s32.totalorder %s35, 0
      %p249 = por %p247, %p248
      %p250 = scmp.ne.s32.totalorder %s242, %s244
      %p251 = scmp.eq.s32.totalorder %s40, 1
      %p252 = por %p250, %p251
      %p253 = scmp.ne.s32.totalorder %s244, %s245
      %p254 = scmp.eq.s32.totalorder %s40, 0
      %p255 = por %p253, %p254
      %p256 = scmp.ne.s32.totalorder %s244, %s245
      %p257 = scmp.eq.s32.totalorder %s41, 1
      %p258 = por %p256, %p257
      %p260 = scmp.ne.s32.totalorder %s245, %s259
      %p261 = scmp.eq.s32.totalorder %s41, 0
      %p262 = por %p260, %p261
      %s264 = sadd.s32 %s263, 1
      %p267 = scmp.eq.s32.totalorder %s35, 1
      %p268 = scmp.ne.s32.totalorder %s263, %s265
      %p269 = scmp.eq.s32.totalorder %s35, 0
      %p270 = por %p268, %p269
      %p271 = scmp.ne.s32.totalorder %s263, %s265
      %p272 = scmp.eq.s32.totalorder %s40, 1
      %p273 = por %p271, %p272
      %p274 = scmp.ne.s32.totalorder %s265, %s266
      %p275 = scmp.eq.s32.totalorder %s40, 0
      %p276 = por %p274, %p275
      %p277 = scmp.ne.s32.totalorder %s265, %s266
      %p278 = scmp.eq.s32.totalorder %s41, 1
      %p279 = por %p277, %p278
      %p281 = scmp.ne.s32.totalorder %s266, %s280
      %p282 = scmp.eq.s32.totalorder %s41, 0
      %p283 = por %p281, %p282
      %s285 = sadd.s32 %s284, 1
      %p288 = scmp.eq.s32.totalorder %s35, 1
      %p289 = scmp.ne.s32.totalorder %s284, %s286
      %p290 = scmp.eq.s32.totalorder %s35, 0
      %p291 = por %p289, %p290
      %p292 = scmp.ne.s32.totalorder %s284, %s286
      %p293 = scmp.eq.s32.totalorder %s40, 1
      %p294 = por %p292, %p293
      %p295 = scmp.ne.s32.totalorder %s286, %s287
      %p296 = scmp.eq.s32.totalorder %s40, 0
      %p297 = por %p295, %p296
      %p298 = scmp.ne.s32.totalorder %s286, %s287
      %p299 = scmp.eq.s32.totalorder %s41, 1
      %p300 = por %p298, %p299
      %p302 = scmp.ne.s32.totalorder %s287, %s301
      %p303 = scmp.eq.s32.totalorder %s41, 0
      %p304 = por %p302, %p303
      %s306 = sadd.s32 %s305, 1
      %p309 = scmp.eq.s32.totalorder %s35, 1
      %p310 = scmp.ne.s32.totalorder %s305, %s307
      %p311 = scmp.eq.s32.totalorder %s35, 0
      %p312 = por %p310, %p311
      %p313 = scmp.ne.s32.totalorder %s305, %s307
      %p314 = scmp.eq.s32.totalorder %s40, 1
      %p315 = por %p313, %p314
      %p316 = scmp.ne.s32.totalorder %s307, %s308
      %p317 = scmp.eq.s32.totalorder %s40, 0
      %p318 = por %p316, %p317
      %p319 = scmp.ne.s32.totalorder %s307, %s308
      %p320 = scmp.eq.s32.totalorder %s41, 1
      %p321 = por %p319, %p320
      %p323 = scmp.ne.s32.totalorder %s308, %s322
      %p324 = scmp.eq.s32.totalorder %s41, 0
      %p325 = por %p323, %p324
      %s327 = sadd.s32 %s326, 1
      %p330 = scmp.eq.s32.totalorder %s35, 1
      %p331 = scmp.ne.s32.totalorder %s326, %s328
      %p332 = scmp.eq.s32.totalorder %s35, 0
      %p333 = por %p331, %p332
      %p334 = scmp.ne.s32.totalorder %s326, %s328
      %p335 = scmp.eq.s32.totalorder %s40, 1
      %p336 = por %p334, %p335
      %p337 = scmp.ne.s32.totalorder %s328, %s329
      %p338 = scmp.eq.s32.totalorder %s40, 0
      %p339 = por %p337, %p338
      %p340 = scmp.ne.s32.totalorder %s328, %s329
      %p341 = scmp.eq.s32.totalorder %s41, 1
      %p342 = por %p340, %p341
      %p344 = scmp.ne.s32.totalorder %s329, %s343
      %p345 = scmp.eq.s32.totalorder %s41, 0
      %p346 = por %p344, %p345
      %s348 = sadd.s32 %s347, 1
      %p351 = scmp.eq.s32.totalorder %s35, 1
      %p352 = scmp.ne.s32.totalorder %s347, %s349
      %p353 = scmp.eq.s32.totalorder %s35, 0
      %p354 = por %p352, %p353
      %p355 = scmp.ne.s32.totalorder %s347, %s349
      %p356 = scmp.eq.s32.totalorder %s40, 1
      %p357 = por %p355, %p356
      %p358 = scmp.ne.s32.totalorder %s349, %s350
      %p359 = scmp.eq.s32.totalorder %s40, 0
      %p360 = por %p358, %p359
      %p361 = scmp.ne.s32.totalorder %s349, %s350
      %p362 = scmp.eq.s32.totalorder %s41, 1
      %p363 = por %p361, %p362
      %p365 = scmp.ne.s32.totalorder %s350, %s364
      %p366 = scmp.eq.s32.totalorder %s41, 0
      %p367 = por %p365, %p366
      %s369 = sadd.s32 %s368, 1
      %p372 = scmp.eq.s32.totalorder %s35, 1
      %p373 = scmp.ne.s32.totalorder %s368, %s370
      %p374 = scmp.eq.s32.totalorder %s35, 0
      %p375 = por %p373, %p374
      %p376 = scmp.ne.s32.totalorder %s368, %s370
      %p377 = scmp.eq.s32.totalorder %s40, 1
      %p378 = por %p376, %p377
      %p379 = scmp.ne.s32.totalorder %s370, %s371
      %p380 = scmp.eq.s32.totalorder %s40, 0
      %p381 = por %p379, %p380
      %p382 = scmp.ne.s32.totalorder %s370, %s371
      %p383 = scmp.eq.s32.totalorder %s41, 1
      %p384 = por %p382, %p383
      %p386 = scmp.ne.s32.totalorder %s371, %s385
      %p387 = scmp.eq.s32.totalorder %s41, 0
      %p388 = por %p386, %p387
      %s389 = ssub.s32 %s35, %s42
      %p390 = scmp.eq.s32.totalorder %s389, 0
      %s392 = sadd.s32 %s391, 1
      %s393 = scalar_select %p390, %s391, %s392
      %p396 = pneg %p390
      %p397 = scmp.eq.s32.totalorder %s35, 1
      %p398 = por %p396, %p397
      %p399 = scmp.ne.s32.totalorder %s391, %s394
      %p400 = scmp.eq.s32.totalorder %s35, 0
      %p401 = por %p399, %p400
      %p402 = scmp.ne.s32.totalorder %s391, %s394
      %p403 = scmp.eq.s32.totalorder %s40, 1
      %p404 = por %p402, %p403
      %p405 = scmp.ne.s32.totalorder %s394, %s395
      %p406 = scmp.eq.s32.totalorder %s40, 0
      %p407 = por %p405, %p406
      %p408 = scmp.ne.s32.totalorder %s394, %s395
      %p409 = scmp.eq.s32.totalorder %s41, 1
      %p410 = por %p408, %p409
      %p412 = scmp.ne.s32.totalorder %s395, %s411
      %p413 = scmp.eq.s32.totalorder %s41, 0
      %p414 = por %p412, %p413
      %p415 = scmp.le.s32.totalorder 1, %s35
      %p416 = scmp.lt.s32.totalorder %s35, 3
      %p417 = pnand %p415, %p416
      %p418 = pneg %p417
      // Predicated region
      $region9: #{tpu_custom_call.1} parent=5 // pred_check
        _
      $region10: #{tpu_custom_call.1} parent=5 // pred_check_branch
        %420 = sbr.rel (%p417) target = $region12
      $region11: #{tpu_custom_call.1} parent=5 // pred_region
        %s421 = ssub.s32 %s35, 1
        // Predicated region
        $region13: #{tpu_custom_call.1} parent=11 // pred_check
          %p422 = pneg %p108
        $region14: #{tpu_custom_call.1} parent=11 // pred_check_branch
          %424 = sbr.rel (%p422) target = $region16
        $region15: #{tpu_custom_call.1} parent=11 // pred_region
          %426 = vsyncadd [#allocation6], 0
          %s428 = sshll.u32 %s2, 4
          %s429 = int_to_ptr.hbm [resolvable:$true] %s428
          %s430 = sshll.u32 [#allocation7], 4
          %s431 = int_to_ptr.vmem [resolvable:$true] %s430
          %433 = dma.hbm_to_vmem [thread:$0]  %s429, 16, %s431, [#allocation6]
        $region16: #{tpu_custom_call.1} parent=11 // pred_fallthru
          _
        // Predicated region
        $region17: #{tpu_custom_call.1} parent=11 // pred_check
          %p434 = pneg %p129
        $region18: #{tpu_custom_call.1} parent=11 // pred_check_branch
          %436 = sbr.rel (%p434) target = $region20
        $region19: #{tpu_custom_call.1} parent=11 // pred_region
          %438 = vsyncadd [#allocation9], 0
          %s440 = sshll.u32 %s3, 4
          %s441 = int_to_ptr.hbm [resolvable:$true] %s440
          %s442 = sshll.u32 [#allocation8], 4
          %s443 = int_to_ptr.vmem [resolvable:$true] %s442
          %445 = dma.hbm_to_vmem [thread:$0]  %s441, 16, %s443, [#allocation9]
        $region20: #{tpu_custom_call.1} parent=11 // pred_fallthru
          _
        // Predicated region
        $region21: #{tpu_custom_call.1} parent=11 // pred_check
          %p446 = pneg %p150
        $region22: #{tpu_custom_call.1} parent=11 // pred_check_branch
          %448 = sbr.rel (%p446) target = $region24
        $region23: #{tpu_custom_call.1} parent=11 // pred_region
          %450 = vsyncadd [#allocation9], 0
          %s452 = sshll.u32 %s4, 4
          %s453 = int_to_ptr.hbm [resolvable:$true] %s452
          %s454 = sshll.u32 [#allocation10], 4
          %s455 = int_to_ptr.vmem [resolvable:$true] %s454
          %457 = dma.hbm_to_vmem [thread:$0]  %s453, 16, %s455, [#allocation9]
        $region24: #{tpu_custom_call.1} parent=11 // pred_fallthru
          _
        // Predicated region
        $region25: #{tpu_custom_call.1} parent=11 // pred_check
          %p458 = pneg %p171
        $region26: #{tpu_custom_call.1} parent=11 // pred_check_branch
          %460 = sbr.rel (%p458) target = $region28
        $region27: #{tpu_custom_call.1} parent=11 // pred_region
          %462 = vsyncadd [#allocation12], 0
          %s464 = sshll.u32 %s5, 4
          %s465 = int_to_ptr.hbm [resolvable:$true] %s464
          %s466 = sshll.u32 [#allocation11], 4
          %s467 = int_to_ptr.vmem [resolvable:$true] %s466
          %469 = dma.hbm_to_vmem [thread:$0]  %s465, 16, %s467, [#allocation12]
        $region28: #{tpu_custom_call.1} parent=11 // pred_fallthru
          _
        // Predicated region
        $region29: #{tpu_custom_call.1} parent=11 // pred_check
          %p470 = pneg %p192
        $region30: #{tpu_custom_call.1} parent=11 // pred_check_branch
          %472 = sbr.rel (%p470) target = $region32
        $region31: #{tpu_custom_call.1} parent=11 // pred_region
          %474 = vsyncadd [#allocation12], 0
          %s475 = sshll.u32 %s6, 4
          %s476 = int_to_ptr.hbm [resolvable:$true] %s475
          %s477 = sshll.u32 [#allocation13], 4
          %s478 = int_to_ptr.vmem [resolvable:$true] %s477
          %483 = dma.hbm_to_vmem [thread:$0]  %s476, 3072, %s478, [#allocation12], 192, 192, 12
        $region32: #{tpu_custom_call.1} parent=11 // pred_fallthru
          _
        // Predicated region
        $region33: #{tpu_custom_call.1} parent=11 // pred_check
          %p484 = pneg %p213
        $region34: #{tpu_custom_call.1} parent=11 // pred_check_branch
          %486 = sbr.rel (%p484) target = $region36
        $region35: #{tpu_custom_call.1} parent=11 // pred_region
          _
        $region36: #{tpu_custom_call.1} parent=11 // pred_fallthru
          _
        // Predicated region
        $region37: #{tpu_custom_call.1} parent=11 // pred_check
          %p487 = pneg %p234
        $region38: #{tpu_custom_call.1} parent=11 // pred_check_branch
          %489 = sbr.rel (%p487) target = $region40
        $region39: #{tpu_custom_call.1} parent=11 // pred_region
          %491 = vsyncadd [#allocation15], 0
          %s492 = sshll.u32 %s8, 4
          %s493 = int_to_ptr.hbm [resolvable:$true] %s492
          %s494 = sshll.u32 [#allocation14], 4
          %s495 = int_to_ptr.vmem [resolvable:$true] %s494
          %500 = dma.hbm_to_vmem [thread:$0]  %s493, 1024, %s495, [#allocation15], 64, 64, 4
        $region40: #{tpu_custom_call.1} parent=11 // pred_fallthru
          _
        // Predicated region
        $region41: #{tpu_custom_call.1} parent=11 // pred_check
          %p501 = pneg %p255
        $region42: #{tpu_custom_call.1} parent=11 // pred_check_branch
          %503 = sbr.rel (%p501) target = $region44
        $region43: #{tpu_custom_call.1} parent=11 // pred_region
          _
        $region44: #{tpu_custom_call.1} parent=11 // pred_fallthru
          _
        // Predicated region
        $region45: #{tpu_custom_call.1} parent=11 // pred_check
          %p504 = pneg %p276
        $region46: #{tpu_custom_call.1} parent=11 // pred_check_branch
          %506 = sbr.rel (%p504) target = $region48
        $region47: #{tpu_custom_call.1} parent=11 // pred_region
          %508 = vsyncadd [#allocation15], 0
          %s509 = sshll.u32 %s10, 4
          %s510 = int_to_ptr.hbm [resolvable:$true] %s509
          %s511 = sshll.u32 [#allocation16], 4
          %s512 = int_to_ptr.vmem [resolvable:$true] %s511
          %517 = dma.hbm_to_vmem [thread:$0]  %s510, 2048, %s512, [#allocation15], 128, 128, 8
        $region48: #{tpu_custom_call.1} parent=11 // pred_fallthru
          _
        // Predicated region
        $region49: #{tpu_custom_call.1} parent=11 // pred_check
          %p518 = pneg %p297
        $region50: #{tpu_custom_call.1} parent=11 // pred_check_branch
          %520 = sbr.rel (%p518) target = $region52
        $region51: #{tpu_custom_call.1} parent=11 // pred_region
          _
        $region52: #{tpu_custom_call.1} parent=11 // pred_fallthru
          _
        // Predicated region
        $region53: #{tpu_custom_call.1} parent=11 // pred_check
          %p521 = pneg %p318
        $region54: #{tpu_custom_call.1} parent=11 // pred_check_branch
          %523 = sbr.rel (%p521) target = $region56
        $region55: #{tpu_custom_call.1} parent=11 // pred_region
          %525 = vsyncadd [#allocation18], 0
          %s526 = sshll.u32 %s12, 4
          %s527 = int_to_ptr.hbm [resolvable:$true] %s526
          %s528 = sshll.u32 [#allocation17], 4
          %s529 = int_to_ptr.vmem [resolvable:$true] %s528
          %534 = dma.hbm_to_vmem [thread:$0]  %s527, 1024, %s529, [#allocation18], 64, 64, 4
        $region56: #{tpu_custom_call.1} parent=11 // pred_fallthru
          _
        // Predicated region
        $region57: #{tpu_custom_call.1} parent=11 // pred_check
          %p535 = pneg %p339
        $region58: #{tpu_custom_call.1} parent=11 // pred_check_branch
          %537 = sbr.rel (%p535) target = $region60
        $region59: #{tpu_custom_call.1} parent=11 // pred_region
          _
        $region60: #{tpu_custom_call.1} parent=11 // pred_fallthru
          _
        // Predicated region
        $region61: #{tpu_custom_call.1} parent=11 // pred_check
          %p538 = pneg %p360
        $region62: #{tpu_custom_call.1} parent=11 // pred_check_branch
          %540 = sbr.rel (%p538) target = $region64
        $region63: #{tpu_custom_call.1} parent=11 // pred_region
          %542 = vsyncadd [#allocation18], 0
          %s543 = sshll.u32 %s14, 4
          %s544 = int_to_ptr.hbm [resolvable:$true] %s543
          %s545 = sshll.u32 [#allocation19], 4
          %s546 = int_to_ptr.vmem [resolvable:$true] %s545
          %551 = dma.hbm_to_vmem [thread:$0]  %s544, 1024, %s546, [#allocation18], 64, 64, 4
        $region64: #{tpu_custom_call.1} parent=11 // pred_fallthru
          _
        // Predicated region
        $region65: #{tpu_custom_call.1} parent=11 // pred_check
          %p552 = pneg %p381
        $region66: #{tpu_custom_call.1} parent=11 // pred_check_branch
          %554 = sbr.rel (%p552) target = $region68
        $region67: #{tpu_custom_call.1} parent=11 // pred_region
          _
        $region68: #{tpu_custom_call.1} parent=11 // pred_fallthru
          _
      $region12: #{tpu_custom_call.1} parent=5 // pred_fallthru
        _
      %p555 = scmp.lt.s32.totalorder %s35, 2
      // Predicated region
      $region69: #{tpu_custom_call.1} parent=5 // pred_check
        %p556 = pneg %p555
      $region70: #{tpu_custom_call.1} parent=5 // pred_check_branch
        %558 = sbr.rel (%p556) target = $region72
      $region71: #{tpu_custom_call.1} parent=5 // pred_region
        // Predicated region
        $region73: #{tpu_custom_call.1} parent=71 // pred_check
          %p559 = pneg %p55
        $region74: #{tpu_custom_call.1} parent=71 // pred_check_branch
          %561 = sbr.rel (%p559) target = $region76
        $region75: #{tpu_custom_call.1} parent=71 // pred_region
          %s562 = sand.u32 %s45, 1
          %s563 = scalar_lea.sflag [#allocation3], %s562
          %s564 = sand.u32 %s45, 1
          %s565 = smul.addr %s564, 16
          %s566 = scalar_lea.vmem [#allocation2], %s565
          %568 = vsyncadd %s563, 0
          %s569 = smul.addr %s35, 2
          %s570 = smul.addr %s569, 8
          %s571 = scalar_lea.hbm %s0, %s570
          %s572 = sshll.u32 %s571, 4
          %s573 = int_to_ptr.hbm [resolvable:$true] %s572
          %s574 = sshll.u32 %s566, 4
          %s575 = int_to_ptr.vmem [resolvable:$true] %s574
          %580 = dma.hbm_to_vmem [thread:$0]  %s573, 256, %s575, %s563, 128, 128, 8
        $region76: #{tpu_custom_call.1} parent=71 // pred_fallthru
          _
        // Predicated region
        $region77: #{tpu_custom_call.1} parent=71 // pred_check
          %p581 = pneg %p81
        $region78: #{tpu_custom_call.1} parent=71 // pred_check_branch
          %583 = sbr.rel (%p581) target = $region80
        $region79: #{tpu_custom_call.1} parent=71 // pred_region
          %s584 = sand.u32 %s35, 1
          %s585 = scalar_lea.sflag [#allocation6], %s584
          %s586 = sand.u32 %s71, 1
          %s587 = smul.addr %s586, 16
          %s588 = scalar_lea.vmem [#allocation5], %s587
          %590 = vsyncadd %s585, 0
          %s591 = smul.addr %s35, 2
          %s592 = smul.addr %s591, 8
          %s593 = scalar_lea.hbm %s1, %s592
          %s594 = sshll.u32 %s593, 4
          %s595 = int_to_ptr.hbm [resolvable:$true] %s594
          %s596 = sshll.u32 %s588, 4
          %s597 = int_to_ptr.vmem [resolvable:$true] %s596
          %602 = dma.hbm_to_vmem [thread:$0]  %s595, 256, %s597, %s585, 128, 128, 8
        $region80: #{tpu_custom_call.1} parent=71 // pred_fallthru
          _
      $region72: #{tpu_custom_call.1} parent=5 // pred_fallthru
        _
      %p603 = scmp.le.s32.totalorder 1, %s35
      %p604 = scmp.lt.s32.totalorder %s35, 3
      %p605 = pnand %p603, %p604
      %p606 = pneg %p605
      // Predicated region
      $region81: #{tpu_custom_call.1} parent=5 // pred_check
        _
      $region82: #{tpu_custom_call.1} parent=5 // pred_check_branch
        %608 = sbr.rel (%p605) target = $region84
      $region83: #{tpu_custom_call.1} parent=5 // pred_region
        %s609 = ssub.s32 %s35, 1
        %s610 = sand.u32 %s48, 1
        %s611 = scalar_lea.sflag [#allocation3], %s610
        %s612 = sand.u32 %s48, 1
        %s613 = smul.addr %s612, 16
        %s614 = scalar_lea.vmem [#allocation2], %s613
        // Predicated region
        $region85: #{tpu_custom_call.1} parent=83 // pred_check
          %p615 = pneg %p61
        $region86: #{tpu_custom_call.1} parent=83 // pred_check_branch
          %617 = sbr.rel (%p615) target = $region88
        $region87: #{tpu_custom_call.1} parent=83 // pred_region
          %619 = dma.done %s611, 256
        $region88: #{tpu_custom_call.1} parent=83 // pred_fallthru
          _
        %s620 = sand.u32 %s40, 1
        %s621 = scalar_lea.sflag [#allocation6], %s620
        %s622 = sand.u32 %s74, 1
        %s623 = smul.addr %s622, 16
        %s624 = scalar_lea.vmem [#allocation5], %s623
        // Predicated region
        $region89: #{tpu_custom_call.1} parent=83 // pred_check
          %p625 = pneg %p87
        $region90: #{tpu_custom_call.1} parent=83 // pred_check_branch
          %627 = sbr.rel (%p625) target = $region92
        $region91: #{tpu_custom_call.1} parent=83 // pred_region
          %629 = dma.done %s621, 256
        $region92: #{tpu_custom_call.1} parent=83 // pred_fallthru
          _
        // Predicated region
        $region93: #{tpu_custom_call.1} parent=83 // pred_check
          %p630 = pneg %p108
        $region94: #{tpu_custom_call.1} parent=83 // pred_check_branch
          %632 = sbr.rel (%p630) target = $region96
        $region95: #{tpu_custom_call.1} parent=83 // pred_region
          %634 = dma.done [#allocation6], 16
        $region96: #{tpu_custom_call.1} parent=83 // pred_fallthru
          _
        // Predicated region
        $region97: #{tpu_custom_call.1} parent=83 // pred_check
          %p635 = pneg %p129
        $region98: #{tpu_custom_call.1} parent=83 // pred_check_branch
          %637 = sbr.rel (%p635) target = $region100
        $region99: #{tpu_custom_call.1} parent=83 // pred_region
          %639 = dma.done [#allocation9], 16
        $region100: #{tpu_custom_call.1} parent=83 // pred_fallthru
          _
        // Predicated region
        $region101: #{tpu_custom_call.1} parent=83 // pred_check
          %p640 = pneg %p150
        $region102: #{tpu_custom_call.1} parent=83 // pred_check_branch
          %642 = sbr.rel (%p640) target = $region104
        $region103: #{tpu_custom_call.1} parent=83 // pred_region
          %644 = dma.done [#allocation9], 16
        $region104: #{tpu_custom_call.1} parent=83 // pred_fallthru
          _
        // Predicated region
        $region105: #{tpu_custom_call.1} parent=83 // pred_check
          %p645 = pneg %p171
        $region106: #{tpu_custom_call.1} parent=83 // pred_check_branch
          %647 = sbr.rel (%p645) target = $region108
        $region107: #{tpu_custom_call.1} parent=83 // pred_region
          %649 = dma.done [#allocation12], 16
        $region108: #{tpu_custom_call.1} parent=83 // pred_fallthru
          _
        // Predicated region
        $region109: #{tpu_custom_call.1} parent=83 // pred_check
          %p650 = pneg %p192
        $region110: #{tpu_custom_call.1} parent=83 // pred_check_branch
          %652 = sbr.rel (%p650) target = $region112
        $region111: #{tpu_custom_call.1} parent=83 // pred_region
          %654 = dma.done [#allocation12], 3072
        $region112: #{tpu_custom_call.1} parent=83 // pred_fallthru
          _
        // Predicated region
        $region113: #{tpu_custom_call.1} parent=83 // pred_check
          %p655 = pneg %p234
        $region114: #{tpu_custom_call.1} parent=83 // pred_check_branch
          %657 = sbr.rel (%p655) target = $region116
        $region115: #{tpu_custom_call.1} parent=83 // pred_region
          %659 = dma.done [#allocation15], 1024
        $region116: #{tpu_custom_call.1} parent=83 // pred_fallthru
          _
        // Predicated region
        $region117: #{tpu_custom_call.1} parent=83 // pred_check
          %p660 = pneg %p276
        $region118: #{tpu_custom_call.1} parent=83 // pred_check_branch
          %662 = sbr.rel (%p660) target = $region120
        $region119: #{tpu_custom_call.1} parent=83 // pred_region
          %664 = dma.done [#allocation15], 2048
        $region120: #{tpu_custom_call.1} parent=83 // pred_fallthru
          _
        // Predicated region
        $region121: #{tpu_custom_call.1} parent=83 // pred_check
          %p665 = pneg %p318
        $region122: #{tpu_custom_call.1} parent=83 // pred_check_branch
          %667 = sbr.rel (%p665) target = $region124
        $region123: #{tpu_custom_call.1} parent=83 // pred_region
          %669 = dma.done [#allocation18], 1024
        $region124: #{tpu_custom_call.1} parent=83 // pred_fallthru
          _
        // Predicated region
        $region125: #{tpu_custom_call.1} parent=83 // pred_check
          %p670 = pneg %p360
        $region126: #{tpu_custom_call.1} parent=83 // pred_check_branch
          %672 = sbr.rel (%p670) target = $region128
        $region127: #{tpu_custom_call.1} parent=83 // pred_region
          %674 = dma.done [#allocation18], 1024
        $region128: #{tpu_custom_call.1} parent=83 // pred_fallthru
          _
        %s675 = sand.u32 %s48, 1
        %s676 = scalar_lea.sflag [#allocation3], %s675
        %s677 = sand.u32 %s48, 1
        %s678 = smul.addr %s677, 16
        %s679 = scalar_lea.vmem [#allocation2], %s678
        %p680 = pneg %p61
        %p681 = pneg %p58
        %s682 = sand.u32 %s40, 1
        %s683 = scalar_lea.sflag [#allocation6], %s682
        %s684 = sand.u32 %s74, 1
        %s685 = smul.addr %s684, 16
        %s686 = scalar_lea.vmem [#allocation5], %s685
        %p687 = pneg %p87
        %p688 = pneg %p84
        %p689 = pneg %p108
        %p690 = pneg %p105
        %p691 = pneg %p129
        %p692 = pneg %p126
        %p693 = pneg %p150
        %p694 = pneg %p147
        %p695 = pneg %p171
        %p696 = pneg %p168
        %p697 = pneg %p192
        %p698 = pneg %p189
        %p699 = pneg %p213
        %p700 = pneg %p210
        %p701 = pneg %p234
        %p702 = pneg %p231
        %p703 = pneg %p255
        %p704 = pneg %p252
        %p705 = pneg %p276
        %p706 = pneg %p273
        %p707 = pneg %p297
        %p708 = pneg %p294
        %p709 = pneg %p318
        %p710 = pneg %p315
        %p711 = pneg %p339
        %p712 = pneg %p336
        %p713 = pneg %p360
        %p714 = pneg %p357
        %p715 = pneg %p381
        %p716 = pneg %p378
        %p717 = pneg %p407
        %p718 = pneg %p404
        %s719 = sand.u32 %s394, 1
        %s720 = scalar_lea.sflag [#allocation4], %s719
        %s721 = sand.u32 %s394, 1
        %s722 = smul.addr %s721, 16
        %s723 = scalar_lea.vmem [#allocation20], %s722
        %v725 = vld [vmem:[%s614] sm:$0xff]
        %v726 = vld [vmem:[%s614 + $0x8] sm:$0xff]
        %v727 = vld [vmem:[%s624] sm:$0xff]
        %v728 = vld [vmem:[%s624 + $0x8] sm:$0xff]
        %v729 = vld [vmem:[#allocation7] sm:$0x1]
        %v730 = vld [vmem:[#allocation8] sm:$0x1]
        %731 = vadd.xlane.f32.xlu0 %v725
        %v732 = vpop.xlane.xlu0 %731
        %733 = vadd.xlane.f32.xlu0 %v726
        %v734 = vpop.xlane.xlu0 %733
        %v735 = vrcp.pop 128.0
        %v736 = vmul.f32 128.0, %v735
        %v737 = vsub.f32 1.0, %v736
        %v738 = vmul.f32 %v735, %v737
        %v739 = vadd.f32 %v735, %v738
        %vm740 = vweird.f32 %v735
        %v741 = vsel %vm740, %v735, %v739
        %v742 = vmul.f32 %v732, %v741
        %v743 = vmul.f32 %v734, %v741
        %v744 = vsub.f32 %v725, %v742
        %v745 = vsub.f32 %v726, %v743
        %v746 = vmul.f32 %v744, %v744
        %v747 = vmul.f32 %v745, %v745
        %748 = vadd.xlane.f32.xlu0 %v746
        %v749 = vpop.xlane.xlu0 %748
        %750 = vadd.xlane.f32.xlu0 %v747
        %v751 = vpop.xlane.xlu0 %750
        %v752 = vmul.f32 %v749, %v741
        %v753 = vmul.f32 %v751, %v741
        %v754 = vadd.f32 %v752, 1e-05
        %v755 = vadd.f32 %v753, 1e-05
        %v756 = vrsqrt.pop %v754
        %v757 = vmul.f32 %v756, %v754
        %v758 = vmul.f32 %v757, %v756
        %v759 = vmul.f32 0.5, %v758
        %v760 = vsub.f32 1.5, %v759
        %v761 = vmul.f32 %v756, %v760
        %vm762 = vweird.f32 %v754
        %vm763 = vweird.f32 %v756
        %vm764 = vmor %vm762, %vm763
        %v765 = vsel %vm764, %v756, %v761
        %v766 = vrsqrt.pop %v755
        %v767 = vmul.f32 %v766, %v755
        %v768 = vmul.f32 %v767, %v766
        %v769 = vmul.f32 0.5, %v768
        %v770 = vsub.f32 1.5, %v769
        %v771 = vmul.f32 %v766, %v770
        %vm772 = vweird.f32 %v755
        %vm773 = vweird.f32 %v766
        %vm774 = vmor %vm772, %vm773
        %v775 = vsel %vm774, %v766, %v771
        %v776 = vmul.f32 %v744, %v765
        %v777 = vmul.f32 %v745, %v775
        %v779 = vperm.slane %v729, 0
        %v781 = vmul.f32 %v776, %v779
        %v782 = vmul.f32 %v777, %v779
        %v784 = vperm.slane %v730, 0
        %v786 = vadd.f32 %v781, %v784
        %v787 = vadd.f32 %v782, %v784
        %v788 = vld [vmem:[#allocation13] sm:$0xff]
        %v789 = vld [vmem:[#allocation13 + $0x8] sm:$0xf]
        %v790 = vld [vmem:[#allocation13 + $0xc] sm:$0xff]
        %v791 = vld [vmem:[#allocation13 + $0x14] sm:$0xf]
        %v792 = vld [vmem:[#allocation13 + $0x18] sm:$0xff]
        %v793 = vld [vmem:[#allocation13 + $0x20] sm:$0xf]
        %v794 = vld [vmem:[#allocation13 + $0x24] sm:$0xff]
        %v795 = vld [vmem:[#allocation13 + $0x2c] sm:$0xf]
        %v796 = vld [vmem:[#allocation13 + $0x30] sm:$0xff]
        %v797 = vld [vmem:[#allocation13 + $0x38] sm:$0xf]
        %v798 = vld [vmem:[#allocation13 + $0x3c] sm:$0xff]
        %v799 = vld [vmem:[#allocation13 + $0x44] sm:$0xf]
        %v800 = vld [vmem:[#allocation13 + $0x48] sm:$0xff]
        %v801 = vld [vmem:[#allocation13 + $0x50] sm:$0xf]
        %v802 = vld [vmem:[#allocation13 + $0x54] sm:$0xff]
        %v803 = vld [vmem:[#allocation13 + $0x5c] sm:$0xf]
        %v804 = vld [vmem:[#allocation13 + $0x60] sm:$0xff]
        %v805 = vld [vmem:[#allocation13 + $0x68] sm:$0xf]
        %v806 = vld [vmem:[#allocation13 + $0x6c] sm:$0xff]
        %v807 = vld [vmem:[#allocation13 + $0x74] sm:$0xf]
        %v808 = vld [vmem:[#allocation13 + $0x78] sm:$0xff]
        %v809 = vld [vmem:[#allocation13 + $0x80] sm:$0xf]
        %v810 = vld [vmem:[#allocation13 + $0x84] sm:$0xff]
        %v811 = vld [vmem:[#allocation13 + $0x8c] sm:$0xf]
        %v812 = vld [vmem:[#allocation13 + $0x90] sm:$0xff]
        %v813 = vld [vmem:[#allocation13 + $0x98] sm:$0xf]
        %v814 = vld [vmem:[#allocation13 + $0x9c] sm:$0xff]
        %v815 = vld [vmem:[#allocation13 + $0xa4] sm:$0xf]
        %v816 = vld [vmem:[#allocation13 + $0xa8] sm:$0xff]
        %v817 = vld [vmem:[#allocation13 + $0xb0] sm:$0xf]
        %v818 = vld [vmem:[#allocation13 + $0xb4] sm:$0xff]
        %v819 = vld [vmem:[#allocation13 + $0xbc] sm:$0xf]
        %v820 = vpack.c.bf16 %v787, %v786
        %v821 = vld [vmem:[%s7] sm:$0x7]
        %v823 = vperm.slane %v821, 0
        %v824 = vperm.slane %v821, 1
        %v825 = vperm.slane %v821, 2
        %v861 = vunpack.c.l.b16 %v788
        %v862 = vunpack.c.h.b16 %v788
        %v863 = vunpack.c.l.b16 %v789
        %v864 = vunpack.c.l.b16 %v790
        %v865 = vunpack.c.h.b16 %v790
        %v866 = vunpack.c.l.b16 %v791
        %v867 = vunpack.c.l.b16 %v792
        %v868 = vunpack.c.h.b16 %v792
        %v869 = vunpack.c.l.b16 %v793
        %v870 = vunpack.c.l.b16 %v794
        %v871 = vunpack.c.h.b16 %v794
        %v872 = vunpack.c.l.b16 %v795
        %v873 = vunpack.c.l.b16 %v796
        %v874 = vunpack.c.h.b16 %v796
        %v875 = vunpack.c.l.b16 %v797
        %v876 = vunpack.c.l.b16 %v798
        %v877 = vunpack.c.h.b16 %v798
        %v878 = vunpack.c.l.b16 %v799
        %v879 = vunpack.c.l.b16 %v800
        %v880 = vunpack.c.h.b16 %v800
        %v881 = vunpack.c.l.b16 %v801
        %v882 = vunpack.c.l.b16 %v802
        %v883 = vunpack.c.h.b16 %v802
        %v884 = vunpack.c.l.b16 %v803
        %v885 = vunpack.c.l.b16 %v804
        %v886 = vunpack.c.h.b16 %v804
        %v887 = vunpack.c.l.b16 %v805
        %v888 = vunpack.c.l.b16 %v806
        %v889 = vunpack.c.h.b16 %v806
        %v890 = vunpack.c.l.b16 %v807
        %v891 = vunpack.c.l.b16 %v808
        %v892 = vunpack.c.h.b16 %v808
        %v893 = vunpack.c.l.b16 %v809
        %v894 = vunpack.c.l.b16 %v810
        %v895 = vunpack.c.h.b16 %v810
        %v896 = vunpack.c.l.b16 %v811
        %v897 = vunpack.c.l.b16 %v812
        %v898 = vunpack.c.h.b16 %v812
        %v899 = vunpack.c.l.b16 %v813
        %v900 = vunpack.c.l.b16 %v814
        %v901 = vunpack.c.h.b16 %v814
        %v902 = vunpack.c.l.b16 %v815
        %v903 = vunpack.c.l.b16 %v816
        %v904 = vunpack.c.h.b16 %v816
        %v905 = vunpack.c.l.b16 %v817
        %v906 = vunpack.c.l.b16 %v818
        %v907 = vunpack.c.h.b16 %v818
        %v908 = vunpack.c.l.b16 %v819
        %v909 = vpack.c.b16 %v864, %v861
        %v910 = vpack.c.b16 %v865, %v862
        %v911 = vpack.c.b16 %v866, %v863
        %v912 = vpack.c.b16 %v870, %v867
        %v913 = vpack.c.b16 %v871, %v868
        %v914 = vpack.c.b16 %v872, %v869
        %v915 = vpack.c.b16 %v876, %v873
        %v916 = vpack.c.b16 %v877, %v874
        %v917 = vpack.c.b16 %v878, %v875
        %v918 = vpack.c.b16 %v882, %v879
        %v919 = vpack.c.b16 %v883, %v880
        %v920 = vpack.c.b16 %v884, %v881
        %v921 = vpack.c.b16 %v888, %v885
        %v922 = vpack.c.b16 %v889, %v886
        %v923 = vpack.c.b16 %v890, %v887
        %v924 = vpack.c.b16 %v894, %v891
        %v925 = vpack.c.b16 %v895, %v892
        %v926 = vpack.c.b16 %v896, %v893
        %v927 = vpack.c.b16 %v900, %v897
        %v928 = vpack.c.b16 %v901, %v898
        %v929 = vpack.c.b16 %v902, %v899
        %v930 = vpack.c.b16 %v906, %v903
        %v931 = vpack.c.b16 %v907, %v904
        %v932 = vpack.c.b16 %v908, %v905
        %957 = vmatpush.bf16.msra.mxu0 %v930
        %958 = vmatpush.bf16.msra.mxu0 %v927
        %959 = vmatpush.bf16.msra.mxu0 %v924
        %960 = vmatpush.bf16.msra.mxu0 %v921
        %961 = vmatpush.bf16.msra.mxu0 %v918
        %962 = vmatpush.bf16.msra.mxu0 %v915
        %963 = vmatpush.bf16.msra.mxu0 %v912
        %964 = vmatpush.bf16.msra.mxu0 %v909
        %965 = vmatmul.bf16.gmra.mxu0 %v820
        %v966 = vpop.f32.mrf.mxu0
        %v967 = vadd.f32 %v823, %v966
        %v968 = vpop.f32.mrf.mxu0
        %v969 = vadd.f32 %v823, %v968
        %970 = vdwg.mxu0
        %971 = vmatpush.bf16.msra.mxu0 %v931
        %972 = vmatpush.bf16.msra.mxu0 %v928
        %973 = vmatpush.bf16.msra.mxu0 %v925
        %974 = vmatpush.bf16.msra.mxu0 %v922
        %975 = vmatpush.bf16.msra.mxu0 %v919
        %976 = vmatpush.bf16.msra.mxu0 %v916
        %977 = vmatpush.bf16.msra.mxu0 %v913
        %978 = vmatpush.bf16.msra.mxu0 %v910
        %979 = vmatmul.bf16.gmra.mxu0 %v820
        %v980 = vpop.f32.mrf.mxu0
        %v981 = vadd.f32 %v824, %v980
        %v982 = vpop.f32.mrf.mxu0
        %v983 = vadd.f32 %v824, %v982
        %984 = vdwg.mxu0
        %985 = vmatpush.bf16.msra.mxu0 %v932
        %986 = vmatpush.bf16.msra.mxu0 %v929
        %987 = vmatpush.bf16.msra.mxu0 %v926
        %988 = vmatpush.bf16.msra.mxu0 %v923
        %989 = vmatpush.bf16.msra.mxu0 %v920
        %990 = vmatpush.bf16.msra.mxu0 %v917
        %991 = vmatpush.bf16.msra.mxu0 %v914
        %992 = vmatpush.bf16.msra.mxu0 %v911
        %993 = vmatmul.bf16.gmra.mxu0 %v820
        %v994 = vpop.f32.mrf.mxu0
        %v995 = vadd.f32 %v825, %v994
        %v996 = vpop.f32.mrf.mxu0
        %v997 = vadd.f32 %v825, %v996
        %998 = vdwg.mxu0
        %v999 = vld [vmem:[#allocation14] sm:$0xf]
        %v1000 = vld [vmem:[#allocation14 + $0x4] sm:$0xf]
        %v1001 = vld [vmem:[#allocation14 + $0x8] sm:$0xf]
        %v1002 = vld [vmem:[#allocation14 + $0xc] sm:$0xf]
        %v1003 = vld [vmem:[#allocation14 + $0x10] sm:$0xf]
        %v1004 = vld [vmem:[#allocation14 + $0x14] sm:$0xf]
        %v1005 = vld [vmem:[#allocation14 + $0x18] sm:$0xf]
        %v1006 = vld [vmem:[#allocation14 + $0x1c] sm:$0xf]
        %v1007 = vld [vmem:[#allocation14 + $0x20] sm:$0xf]
        %v1008 = vld [vmem:[#allocation14 + $0x24] sm:$0xf]
        %v1009 = vld [vmem:[#allocation14 + $0x28] sm:$0xf]
        %v1010 = vld [vmem:[#allocation14 + $0x2c] sm:$0xf]
        %v1011 = vld [vmem:[#allocation14 + $0x30] sm:$0xf]
        %v1012 = vld [vmem:[#allocation14 + $0x34] sm:$0xf]
        %v1013 = vld [vmem:[#allocation14 + $0x38] sm:$0xf]
        %v1014 = vld [vmem:[#allocation14 + $0x3c] sm:$0xf]
        %v1015 = vmul.f32 %v967, 0.17677669
        %v1016 = vmul.f32 %v969, 0.17677669
        %v1017 = vpack.c.bf16 %v1015, %v1015
        %v1018 = vpack.c.bf16 %v1016, %v1016
        %v1019 = vpack.c.bf16 %v981, %v981
        %v1020 = vpack.c.bf16 %v983, %v983
        %v1021 = vpack.c.bf16 %v995, %v995
        %v1022 = vpack.c.bf16 %v997, %v997
        %v1023 = vlaneseq
        %v1024 = vshrl.u32 %v1023, 7
        %v1025 = vadd.s32 %v1024, 8
        %v1026 = vlaneseq
        %v1027 = vand.u32 %v1026, 127
        %vm1028 = vcmp.ge.s32.totalorder %v1024, %v1027
        %vm1029 = vcmp.ge.s32.totalorder %v1025, %v1027
        %v1032 = vunpack.c.l.b16 %v1017
        %v1033 = vunpack.c.l.b16 %v1018
        %v1034 = vpack.c.b16 %v1033, %v1032
        %v1037 = vunpack.c.l.b16 %v1019
        %v1038 = vunpack.c.l.b16 %v1020
        %v1039 = vpack.c.b16 %v1038, %v1037
        %vm1040 = vcmask 261120
        %v1042 = vsel %vm1040, %v1034, 0
        %v1045 = vsel %vm1040, %v1039, 0
        %1047 = vmatpush.bf16.xpose.msra.mxu0 0
        %1048 = vmatpush.bf16.xpose.msra.mxu0 0
        %1049 = vmatpush.bf16.xpose.msra.mxu0 0
        %1050 = vmatpush.bf16.xpose.msra.mxu0 0
        %1051 = vmatpush.bf16.xpose.msra.mxu0 0
        %1052 = vmatpush.bf16.xpose.msra.mxu0 0
        %1053 = vmatpush.bf16.xpose.msra.mxu0 0
        %1054 = vmatpush.bf16.xpose.msra.mxu0 %v1045
        %1055 = vmatmul.bf16.gmra.mxu0 %v1042
        %v1056 = vpop.f32.mrf.mxu0
        %v1057 = vadd.f32 0.0, %v1056
        %v1058 = vpop.f32.mrf.mxu0
        %v1059 = vadd.f32 0.0, %v1058
        %1060 = vdwg.mxu0
        %v1061 = vsel %vm1028, %v1057, -1e+30
        %v1062 = vsel %vm1029, %v1059, -1e+30
        %vm1063 = vcmask 130048
        %v1064 = vsel %vm1063, %v1061, -inf
        %1065 = vmax.xlane.f32.xlu0 %v1064
        %v1066 = vpop.xlane.xlu0 %1065
        %v1067 = vsel %vm1063, %v1062, -inf
        %1068 = vmax.xlane.f32.xlu0 %v1067
        %v1069 = vpop.xlane.xlu0 %1068
        %v1070 = vsub.f32 %v1061, %v1066
        %v1071 = vsub.f32 %v1062, %v1069
        %v1072 = vmul.f32 %v1070, 1.442695
        %v1073 = vpow.pop %v1072
        %v1074 = vmul.f32 %v1071, 1.442695
        %v1075 = vpow.pop %v1074
        %v1076 = vsel %vm1063, %v1073, 0.0
        %1077 = vadd.xlane.f32.xlu0 %v1076
        %v1078 = vpop.xlane.xlu0 %1077
        %v1079 = vsel %vm1063, %v1075, 0.0
        %1080 = vadd.xlane.f32.xlu0 %v1079
        %v1081 = vpop.xlane.xlu0 %1080
        %v1082 = vrcp.pop %v1078
        %v1083 = vrcp.pop %v1081
        %v1084 = vmul.f32 %v1073, %v1082
        %v1085 = vmul.f32 %v1075, %v1083
        %v1086 = vpack.c.bf16 %v1085, %v1084
        %v1089 = vunpack.c.l.b16 %v1021
        %v1090 = vunpack.c.l.b16 %v1022
        %v1091 = vpack.c.b16 %v1090, %v1089
        %v1094 = vsel %vm1063, %v1086, 0
        %1096 = vmatpush.bf16.msra.mxu0 0
        %1097 = vmatpush.bf16.msra.mxu0 0
        %1098 = vmatpush.bf16.msra.mxu0 0
        %1099 = vmatpush.bf16.msra.mxu0 0
        %1100 = vmatpush.bf16.msra.mxu0 0
        %1101 = vmatpush.bf16.msra.mxu0 0
        %1102 = vmatpush.bf16.msra.mxu0 0
        %1103 = vmatpush.bf16.msra.mxu0 %v1091
        %1104 = vmatmul.bf16.gmra.mxu0 %v1094
        %v1105 = vpop.f32.mrf.mxu0
        %v1106 = vadd.f32 0.0, %v1105
        %v1107 = vpop.f32.mrf.mxu0
        %v1108 = vadd.f32 0.0, %v1107
        %1109 = vdwg.mxu0
        %v1110 = vpack.c.bf16 %v1108, %v1106
        %1111 = vrot.lane.b32.xlu0 %v1034, 96
        %v1112 = vpop.permute.xlu0 %1111
        %1113 = vrot.lane.b32.xlu0 %v1039, 96
        %v1114 = vpop.permute.xlu0 %1113
        %v1116 = vsel %vm1040, %v1112, 0
        %v1119 = vsel %vm1040, %v1114, 0
        %1121 = vmatpush.bf16.xpose.msra.mxu0 0
        %1122 = vmatpush.bf16.xpose.msra.mxu0 0
        %1123 = vmatpush.bf16.xpose.msra.mxu0 0
        %1124 = vmatpush.bf16.xpose.msra.mxu0 0
        %1125 = vmatpush.bf16.xpose.msra.mxu0 0
        %1126 = vmatpush.bf16.xpose.msra.mxu0 0
        %1127 = vmatpush.bf16.xpose.msra.mxu0 0
        %1128 = vmatpush.bf16.xpose.msra.mxu0 %v1119
        %1129 = vmatmul.bf16.gmra.mxu0 %v1116
        %v1130 = vpop.f32.mrf.mxu0
        %v1131 = vadd.f32 0.0, %v1130
        %v1132 = vpop.f32.mrf.mxu0
        %v1133 = vadd.f32 0.0, %v1132
        %1134 = vdwg.mxu0
        %v1135 = vsel %vm1028, %v1131, -1e+30
        %v1136 = vsel %vm1029, %v1133, -1e+30
        %v1137 = vsel %vm1063, %v1135, -inf
        %1138 = vmax.xlane.f32.xlu0 %v1137
        %v1139 = vpop.xlane.xlu0 %1138
        %v1140 = vsel %vm1063, %v1136, -inf
        %1141 = vmax.xlane.f32.xlu0 %v1140
        %v1142 = vpop.xlane.xlu0 %1141
        %v1143 = vsub.f32 %v1135, %v1139
        %v1144 = vsub.f32 %v1136, %v1142
        %v1145 = vmul.f32 %v1143, 1.442695
        %v1146 = vpow.pop %v1145
        %v1147 = vmul.f32 %v1144, 1.442695
        %v1148 = vpow.pop %v1147
        %v1149 = vsel %vm1063, %v1146, 0.0
        %1150 = vadd.xlane.f32.xlu0 %v1149
        %v1151 = vpop.xlane.xlu0 %1150
        %v1152 = vsel %vm1063, %v1148, 0.0
        %1153 = vadd.xlane.f32.xlu0 %v1152
        %v1154 = vpop.xlane.xlu0 %1153
        %v1155 = vrcp.pop %v1151
        %v1156 = vrcp.pop %v1154
        %v1157 = vmul.f32 %v1146, %v1155
        %v1158 = vmul.f32 %v1148, %v1156
        %v1159 = vpack.c.bf16 %v1158, %v1157
        %1160 = vrot.lane.b32.xlu0 %v1091, 96
        %v1161 = vpop.permute.xlu0 %1160
        %v1164 = vsel %vm1063, %v1159, 0
        %1166 = vmatpush.bf16.msra.mxu0 0
        %1167 = vmatpush.bf16.msra.mxu0 0
        %1168 = vmatpush.bf16.msra.mxu0 0
        %1169 = vmatpush.bf16.msra.mxu0 0
        %1170 = vmatpush.bf16.msra.mxu0 0
        %1171 = vmatpush.bf16.msra.mxu0 0
        %1172 = vmatpush.bf16.msra.mxu0 0
        %1173 = vmatpush.bf16.msra.mxu0 %v1161
        %1174 = vmatmul.bf16.gmra.mxu0 %v1164
        %v1175 = vpop.f32.mrf.mxu0
        %v1176 = vadd.f32 0.0, %v1175
        %v1177 = vpop.f32.mrf.mxu0
        %v1178 = vadd.f32 0.0, %v1177
        %1179 = vdwg.mxu0
        %v1180 = vpack.c.bf16 %v1178, %v1176
        %v1185 = vunpack.c.l.b16 %v1003
        %v1186 = vunpack.c.l.b16 %v1004
        %v1187 = vunpack.c.l.b16 %v1005
        %v1188 = vunpack.c.l.b16 %v1006
        %v1189 = vpack.c.b16 %v1186, %v1185
        %v1190 = vpack.c.b16 %v1188, %v1187
        %v1194 = vsel %vm1040, %v1180, 0
        %1196 = vmatpush.bf16.msra.mxu0 0
        %1197 = vmatpush.bf16.msra.mxu0 0
        %1198 = vmatpush.bf16.msra.mxu0 0
        %1199 = vmatpush.bf16.msra.mxu0 0
        %1200 = vmatpush.bf16.msra.mxu0 0
        %1201 = vmatpush.bf16.msra.mxu0 0
        %1202 = vmatpush.bf16.msra.mxu0 %v1190
        %1203 = vmatpush.bf16.msra.mxu0 %v1189
        %1204 = vmatmul.bf16.gmra.mxu0 %v1194
        %v1205 = vpop.f32.mrf.mxu0
        %v1206 = vadd.f32 0.0, %v1205
        %v1207 = vpop.f32.mrf.mxu0
        %v1208 = vadd.f32 0.0, %v1207
        %1209 = vdwg.mxu0
        %v1214 = vunpack.c.l.b16 %v999
        %v1215 = vunpack.c.l.b16 %v1000
        %v1216 = vunpack.c.l.b16 %v1001
        %v1217 = vunpack.c.l.b16 %v1002
        %v1218 = vpack.c.b16 %v1215, %v1214
        %v1219 = vpack.c.b16 %v1217, %v1216
        %v1223 = vsel %vm1040, %v1110, 0
        %1225 = vmatpush.bf16.msra.mxu0 0
        %1226 = vmatpush.bf16.msra.mxu0 0
        %1227 = vmatpush.bf16.msra.mxu0 0
        %1228 = vmatpush.bf16.msra.mxu0 0
        %1229 = vmatpush.bf16.msra.mxu0 0
        %1230 = vmatpush.bf16.msra.mxu0 0
        %1231 = vmatpush.bf16.msra.mxu0 %v1219
        %1232 = vmatpush.bf16.msra.mxu0 %v1218
        %1233 = vmatmul.bf16.gmra.mxu0 %v1223
        %v1234 = vpop.f32.mrf.mxu0
        %v1235 = vadd.f32 %v1206, %v1234
        %v1236 = vpop.f32.mrf.mxu0
        %v1237 = vadd.f32 %v1208, %v1236
        %1238 = vdwg.mxu0
        %1239 = vrot.lane.b32.xlu0 %v1034, 64
        %v1240 = vpop.permute.xlu0 %1239
        %1241 = vrot.lane.b32.xlu0 %v1039, 64
        %v1242 = vpop.permute.xlu0 %1241
        %v1244 = vsel %vm1040, %v1240, 0
        %v1247 = vsel %vm1040, %v1242, 0
        %1249 = vmatpush.bf16.xpose.msra.mxu0 0
        %1250 = vmatpush.bf16.xpose.msra.mxu0 0
        %1251 = vmatpush.bf16.xpose.msra.mxu0 0
        %1252 = vmatpush.bf16.xpose.msra.mxu0 0
        %1253 = vmatpush.bf16.xpose.msra.mxu0 0
        %1254 = vmatpush.bf16.xpose.msra.mxu0 0
        %1255 = vmatpush.bf16.xpose.msra.mxu0 0
        %1256 = vmatpush.bf16.xpose.msra.mxu0 %v1247
        %1257 = vmatmul.bf16.gmra.mxu0 %v1244
        %v1258 = vpop.f32.mrf.mxu0
        %v1259 = vadd.f32 0.0, %v1258
        %v1260 = vpop.f32.mrf.mxu0
        %v1261 = vadd.f32 0.0, %v1260
        %1262 = vdwg.mxu0
        %v1263 = vsel %vm1028, %v1259, -1e+30
        %v1264 = vsel %vm1029, %v1261, -1e+30
        %v1265 = vsel %vm1063, %v1263, -inf
        %1266 = vmax.xlane.f32.xlu0 %v1265
        %v1267 = vpop.xlane.xlu0 %1266
        %v1268 = vsel %vm1063, %v1264, -inf
        %1269 = vmax.xlane.f32.xlu0 %v1268
        %v1270 = vpop.xlane.xlu0 %1269
        %v1271 = vsub.f32 %v1263, %v1267
        %v1272 = vsub.f32 %v1264, %v1270
        %v1273 = vmul.f32 %v1271, 1.442695
        %v1274 = vpow.pop %v1273
        %v1275 = vmul.f32 %v1272, 1.442695
        %v1276 = vpow.pop %v1275
        %v1277 = vsel %vm1063, %v1274, 0.0
        %1278 = vadd.xlane.f32.xlu0 %v1277
        %v1279 = vpop.xlane.xlu0 %1278
        %v1280 = vsel %vm1063, %v1276, 0.0
        %1281 = vadd.xlane.f32.xlu0 %v1280
        %v1282 = vpop.xlane.xlu0 %1281
        %v1283 = vrcp.pop %v1279
        %v1284 = vrcp.pop %v1282
        %v1285 = vmul.f32 %v1274, %v1283
        %v1286 = vmul.f32 %v1276, %v1284
        %v1287 = vpack.c.bf16 %v1286, %v1285
        %1288 = vrot.lane.b32.xlu0 %v1091, 64
        %v1289 = vpop.permute.xlu0 %1288
        %v1292 = vsel %vm1063, %v1287, 0
        %1294 = vmatpush.bf16.msra.mxu0 0
        %1295 = vmatpush.bf16.msra.mxu0 0
        %1296 = vmatpush.bf16.msra.mxu0 0
        %1297 = vmatpush.bf16.msra.mxu0 0
        %1298 = vmatpush.bf16.msra.mxu0 0
        %1299 = vmatpush.bf16.msra.mxu0 0
        %1300 = vmatpush.bf16.msra.mxu0 0
        %1301 = vmatpush.bf16.msra.mxu0 %v1289
        %1302 = vmatmul.bf16.gmra.mxu0 %v1292
        %v1303 = vpop.f32.mrf.mxu0
        %v1304 = vadd.f32 0.0, %v1303
        %v1305 = vpop.f32.mrf.mxu0
        %v1306 = vadd.f32 0.0, %v1305
        %1307 = vdwg.mxu0
        %v1308 = vpack.c.bf16 %v1306, %v1304
        %v1313 = vunpack.c.l.b16 %v1007
        %v1314 = vunpack.c.l.b16 %v1008
        %v1315 = vunpack.c.l.b16 %v1009
        %v1316 = vunpack.c.l.b16 %v1010
        %v1317 = vpack.c.b16 %v1314, %v1313
        %v1318 = vpack.c.b16 %v1316, %v1315
        %v1322 = vsel %vm1040, %v1308, 0
        %1324 = vmatpush.bf16.msra.mxu0 0
        %1325 = vmatpush.bf16.msra.mxu0 0
        %1326 = vmatpush.bf16.msra.mxu0 0
        %1327 = vmatpush.bf16.msra.mxu0 0
        %1328 = vmatpush.bf16.msra.mxu0 0
        %1329 = vmatpush.bf16.msra.mxu0 0
        %1330 = vmatpush.bf16.msra.mxu0 %v1318
        %1331 = vmatpush.bf16.msra.mxu0 %v1317
        %1332 = vmatmul.bf16.gmra.mxu0 %v1322
        %v1333 = vpop.f32.mrf.mxu0
        %v1334 = vadd.f32 0.0, %v1333
        %v1335 = vpop.f32.mrf.mxu0
        %v1336 = vadd.f32 0.0, %v1335
        %1337 = vdwg.mxu0
        %v1338 = vadd.f32 %v1235, %v1334
        %v1339 = vadd.f32 %v1237, %v1336
        %1340 = vrot.lane.b32.xlu0 %v1034, 32
        %v1341 = vpop.permute.xlu0 %1340
        %1342 = vrot.lane.b32.xlu0 %v1039, 32
        %v1343 = vpop.permute.xlu0 %1342
        %v1345 = vsel %vm1040, %v1341, 0
        %v1348 = vsel %vm1040, %v1343, 0
        %1350 = vmatpush.bf16.xpose.msra.mxu0 0
        %1351 = vmatpush.bf16.xpose.msra.mxu0 0
        %1352 = vmatpush.bf16.xpose.msra.mxu0 0
        %1353 = vmatpush.bf16.xpose.msra.mxu0 0
        %1354 = vmatpush.bf16.xpose.msra.mxu0 0
        %1355 = vmatpush.bf16.xpose.msra.mxu0 0
        %1356 = vmatpush.bf16.xpose.msra.mxu0 0
        %1357 = vmatpush.bf16.xpose.msra.mxu0 %v1348
        %1358 = vmatmul.bf16.gmra.mxu0 %v1345
        %v1359 = vpop.f32.mrf.mxu0
        %v1360 = vadd.f32 0.0, %v1359
        %v1361 = vpop.f32.mrf.mxu0
        %v1362 = vadd.f32 0.0, %v1361
        %1363 = vdwg.mxu0
        %v1364 = vsel %vm1028, %v1360, -1e+30
        %v1365 = vsel %vm1029, %v1362, -1e+30
        %v1366 = vsel %vm1063, %v1364, -inf
        %1367 = vmax.xlane.f32.xlu0 %v1366
        %v1368 = vpop.xlane.xlu0 %1367
        %v1369 = vsel %vm1063, %v1365, -inf
        %1370 = vmax.xlane.f32.xlu0 %v1369
        %v1371 = vpop.xlane.xlu0 %1370
        %v1372 = vsub.f32 %v1364, %v1368
        %v1373 = vsub.f32 %v1365, %v1371
        %v1374 = vmul.f32 %v1372, 1.442695
        %v1375 = vpow.pop %v1374
        %v1376 = vmul.f32 %v1373, 1.442695
        %v1377 = vpow.pop %v1376
        %v1378 = vsel %vm1063, %v1375, 0.0
        %1379 = vadd.xlane.f32.xlu0 %v1378
        %v1380 = vpop.xlane.xlu0 %1379
        %v1381 = vsel %vm1063, %v1377, 0.0
        %1382 = vadd.xlane.f32.xlu0 %v1381
        %v1383 = vpop.xlane.xlu0 %1382
        %v1384 = vrcp.pop %v1380
        %v1385 = vrcp.pop %v1383
        %v1386 = vmul.f32 %v1375, %v1384
        %v1387 = vmul.f32 %v1377, %v1385
        %v1388 = vpack.c.bf16 %v1387, %v1386
        %1389 = vrot.lane.b32.xlu0 %v1091, 32
        %v1390 = vpop.permute.xlu0 %1389
        %v1393 = vsel %vm1063, %v1388, 0
        %1395 = vmatpush.bf16.msra.mxu0 0
        %1396 = vmatpush.bf16.msra.mxu0 0
        %1397 = vmatpush.bf16.msra.mxu0 0
        %1398 = vmatpush.bf16.msra.mxu0 0
        %1399 = vmatpush.bf16.msra.mxu0 0
        %1400 = vmatpush.bf16.msra.mxu0 0
        %1401 = vmatpush.bf16.msra.mxu0 0
        %1402 = vmatpush.bf16.msra.mxu0 %v1390
        %1403 = vmatmul.bf16.gmra.mxu0 %v1393
        %v1404 = vpop.f32.mrf.mxu0
        %v1405 = vadd.f32 0.0, %v1404
        %v1406 = vpop.f32.mrf.mxu0
        %v1407 = vadd.f32 0.0, %v1406
        %1408 = vdwg.mxu0
        %v1409 = vpack.c.bf16 %v1407, %v1405
        %v1414 = vunpack.c.l.b16 %v1011
        %v1415 = vunpack.c.l.b16 %v1012
        %v1416 = vunpack.c.l.b16 %v1013
        %v1417 = vunpack.c.l.b16 %v1014
        %v1418 = vpack.c.b16 %v1415, %v1414
        %v1419 = vpack.c.b16 %v1417, %v1416
        %v1423 = vsel %vm1040, %v1409, 0
        %1425 = vmatpush.bf16.msra.mxu0 0
        %1426 = vmatpush.bf16.msra.mxu0 0
        %1427 = vmatpush.bf16.msra.mxu0 0
        %1428 = vmatpush.bf16.msra.mxu0 0
        %1429 = vmatpush.bf16.msra.mxu0 0
        %1430 = vmatpush.bf16.msra.mxu0 0
        %1431 = vmatpush.bf16.msra.mxu0 %v1419
        %1432 = vmatpush.bf16.msra.mxu0 %v1418
        %1433 = vmatmul.bf16.gmra.mxu0 %v1423
        %v1434 = vpop.f32.mrf.mxu0
        %v1435 = vadd.f32 0.0, %v1434
        %v1436 = vpop.f32.mrf.mxu0
        %v1437 = vadd.f32 0.0, %v1436
        %1438 = vdwg.mxu0
        %v1439 = vadd.f32 %v1338, %v1435
        %v1440 = vadd.f32 %v1339, %v1437
        %v1441 = vadd.f32 %v725, %v1439
        %v1442 = vadd.f32 %v726, %v1440
        %v1443 = vld [vmem:[%s9] sm:$0x1]
        %v1445 = vperm.slane %v1443, 0
        %v1447 = vadd.f32 %v1441, %v1445
        %v1448 = vadd.f32 %v1442, %v1445
        %v1449 = vld [vmem:[#allocation10] sm:$0x1]
        %v1450 = vld [vmem:[#allocation11] sm:$0x1]
        %1451 = vadd.xlane.f32.xlu0 %v1447
        %v1452 = vpop.xlane.xlu0 %1451
        %1453 = vadd.xlane.f32.xlu0 %v1448
        %v1454 = vpop.xlane.xlu0 %1453
        %v1455 = vmul.f32 %v1452, %v741
        %v1456 = vmul.f32 %v1454, %v741
        %v1457 = vsub.f32 %v1447, %v1455
        %v1458 = vsub.f32 %v1448, %v1456
        %v1459 = vmul.f32 %v1457, %v1457
        %v1460 = vmul.f32 %v1458, %v1458
        %1461 = vadd.xlane.f32.xlu0 %v1459
        %v1462 = vpop.xlane.xlu0 %1461
        %1463 = vadd.xlane.f32.xlu0 %v1460
        %v1464 = vpop.xlane.xlu0 %1463
        %v1465 = vmul.f32 %v1462, %v741
        %v1466 = vmul.f32 %v1464, %v741
        %v1467 = vadd.f32 %v1465, 1e-05
        %v1468 = vadd.f32 %v1466, 1e-05
        %v1469 = vrsqrt.pop %v1467
        %v1470 = vmul.f32 %v1469, %v1467
        %v1471 = vmul.f32 %v1470, %v1469
        %v1472 = vmul.f32 0.5, %v1471
        %v1473 = vsub.f32 1.5, %v1472
        %v1474 = vmul.f32 %v1469, %v1473
        %vm1475 = vweird.f32 %v1467
        %vm1476 = vweird.f32 %v1469
        %vm1477 = vmor %vm1475, %vm1476
        %v1478 = vsel %vm1477, %v1469, %v1474
        %v1479 = vrsqrt.pop %v1468
        %v1480 = vmul.f32 %v1479, %v1468
        %v1481 = vmul.f32 %v1480, %v1479
        %v1482 = vmul.f32 0.5, %v1481
        %v1483 = vsub.f32 1.5, %v1482
        %v1484 = vmul.f32 %v1479, %v1483
        %vm1485 = vweird.f32 %v1468
        %vm1486 = vweird.f32 %v1479
        %vm1487 = vmor %vm1485, %vm1486
        %v1488 = vsel %vm1487, %v1479, %v1484
        %v1489 = vmul.f32 %v1457, %v1478
        %v1490 = vmul.f32 %v1458, %v1488
        %v1492 = vperm.slane %v1449, 0
        %v1494 = vmul.f32 %v1489, %v1492
        %v1495 = vmul.f32 %v1490, %v1492
        %v1497 = vperm.slane %v1450, 0
        %v1499 = vadd.f32 %v1494, %v1497
        %v1500 = vadd.f32 %v1495, %v1497
        %v1501 = vld [vmem:[#allocation16] sm:$0xff]
        %v1502 = vld [vmem:[#allocation16 + $0x8] sm:$0xff]
        %v1503 = vld [vmem:[#allocation16 + $0x10] sm:$0xff]
        %v1504 = vld [vmem:[#allocation16 + $0x18] sm:$0xff]
        %v1505 = vld [vmem:[#allocation16 + $0x20] sm:$0xff]
        %v1506 = vld [vmem:[#allocation16 + $0x28] sm:$0xff]
        %v1507 = vld [vmem:[#allocation16 + $0x30] sm:$0xff]
        %v1508 = vld [vmem:[#allocation16 + $0x38] sm:$0xff]
        %v1509 = vld [vmem:[#allocation16 + $0x40] sm:$0xff]
        %v1510 = vld [vmem:[#allocation16 + $0x48] sm:$0xff]
        %v1511 = vld [vmem:[#allocation16 + $0x50] sm:$0xff]
        %v1512 = vld [vmem:[#allocation16 + $0x58] sm:$0xff]
        %v1513 = vld [vmem:[#allocation16 + $0x60] sm:$0xff]
        %v1514 = vld [vmem:[#allocation16 + $0x68] sm:$0xff]
        %v1515 = vld [vmem:[#allocation16 + $0x70] sm:$0xff]
        %v1516 = vld [vmem:[#allocation16 + $0x78] sm:$0xff]
        %v1517 = vpack.c.bf16 %v1500, %v1499
        %v1518 = vld [vmem:[%s11] sm:$0x3]
        %v1520 = vperm.slane %v1518, 0
        %v1521 = vperm.slane %v1518, 1
        %v1540 = vunpack.c.l.b16 %v1501
        %v1541 = vunpack.c.h.b16 %v1501
        %v1542 = vunpack.c.l.b16 %v1502
        %v1543 = vunpack.c.h.b16 %v1502
        %v1544 = vunpack.c.l.b16 %v1503
        %v1545 = vunpack.c.h.b16 %v1503
        %v1546 = vunpack.c.l.b16 %v1504
        %v1547 = vunpack.c.h.b16 %v1504
        %v1548 = vunpack.c.l.b16 %v1505
        %v1549 = vunpack.c.h.b16 %v1505
        %v1550 = vunpack.c.l.b16 %v1506
        %v1551 = vunpack.c.h.b16 %v1506
        %v1552 = vunpack.c.l.b16 %v1507
        %v1553 = vunpack.c.h.b16 %v1507
        %v1554 = vunpack.c.l.b16 %v1508
        %v1555 = vunpack.c.h.b16 %v1508
        %v1556 = vunpack.c.l.b16 %v1509
        %v1557 = vunpack.c.h.b16 %v1509
        %v1558 = vunpack.c.l.b16 %v1510
        %v1559 = vunpack.c.h.b16 %v1510
        %v1560 = vunpack.c.l.b16 %v1511
        %v1561 = vunpack.c.h.b16 %v1511
        %v1562 = vunpack.c.l.b16 %v1512
        %v1563 = vunpack.c.h.b16 %v1512
        %v1564 = vunpack.c.l.b16 %v1513
        %v1565 = vunpack.c.h.b16 %v1513
        %v1566 = vunpack.c.l.b16 %v1514
        %v1567 = vunpack.c.h.b16 %v1514
        %v1568 = vunpack.c.l.b16 %v1515
        %v1569 = vunpack.c.h.b16 %v1515
        %v1570 = vunpack.c.l.b16 %v1516
        %v1571 = vunpack.c.h.b16 %v1516
        %v1572 = vpack.c.b16 %v1542, %v1540
        %v1573 = vpack.c.b16 %v1543, %v1541
        %v1574 = vpack.c.b16 %v1546, %v1544
        %v1575 = vpack.c.b16 %v1547, %v1545
        %v1576 = vpack.c.b16 %v1550, %v1548
        %v1577 = vpack.c.b16 %v1551, %v1549
        %v1578 = vpack.c.b16 %v1554, %v1552
        %v1579 = vpack.c.b16 %v1555, %v1553
        %v1580 = vpack.c.b16 %v1558, %v1556
        %v1581 = vpack.c.b16 %v1559, %v1557
        %v1582 = vpack.c.b16 %v1562, %v1560
        %v1583 = vpack.c.b16 %v1563, %v1561
        %v1584 = vpack.c.b16 %v1566, %v1564
        %v1585 = vpack.c.b16 %v1567, %v1565
        %v1586 = vpack.c.b16 %v1570, %v1568
        %v1587 = vpack.c.b16 %v1571, %v1569
        %1604 = vmatpush.bf16.msra.mxu0 %v1586
        %1605 = vmatpush.bf16.msra.mxu0 %v1584
        %1606 = vmatpush.bf16.msra.mxu0 %v1582
        %1607 = vmatpush.bf16.msra.mxu0 %v1580
        %1608 = vmatpush.bf16.msra.mxu0 %v1578
        %1609 = vmatpush.bf16.msra.mxu0 %v1576
        %1610 = vmatpush.bf16.msra.mxu0 %v1574
        %1611 = vmatpush.bf16.msra.mxu0 %v1572
        %1612 = vmatmul.bf16.gmra.mxu0 %v1517
        %v1613 = vpop.f32.mrf.mxu0
        %v1614 = vadd.f32 %v1520, %v1613
        %v1615 = vpop.f32.mrf.mxu0
        %v1616 = vadd.f32 %v1520, %v1615
        %1617 = vdwg.mxu0
        %1618 = vmatpush.bf16.msra.mxu0 %v1587
        %1619 = vmatpush.bf16.msra.mxu0 %v1585
        %1620 = vmatpush.bf16.msra.mxu0 %v1583
        %1621 = vmatpush.bf16.msra.mxu0 %v1581
        %1622 = vmatpush.bf16.msra.mxu0 %v1579
        %1623 = vmatpush.bf16.msra.mxu0 %v1577
        %1624 = vmatpush.bf16.msra.mxu0 %v1575
        %1625 = vmatpush.bf16.msra.mxu0 %v1573
        %1626 = vmatmul.bf16.gmra.mxu0 %v1517
        %v1627 = vpop.f32.mrf.mxu0
        %v1628 = vadd.f32 %v1521, %v1627
        %v1629 = vpop.f32.mrf.mxu0
        %v1630 = vadd.f32 %v1521, %v1629
        %1631 = vdwg.mxu0
        %v1632 = vld [vmem:[#allocation17] sm:$0xf]
        %v1633 = vld [vmem:[#allocation17 + $0x4] sm:$0xf]
        %v1634 = vld [vmem:[#allocation17 + $0x8] sm:$0xf]
        %v1635 = vld [vmem:[#allocation17 + $0xc] sm:$0xf]
        %v1636 = vld [vmem:[#allocation17 + $0x10] sm:$0xf]
        %v1637 = vld [vmem:[#allocation17 + $0x14] sm:$0xf]
        %v1638 = vld [vmem:[#allocation17 + $0x18] sm:$0xf]
        %v1639 = vld [vmem:[#allocation17 + $0x1c] sm:$0xf]
        %v1640 = vld [vmem:[#allocation17 + $0x20] sm:$0xf]
        %v1641 = vld [vmem:[#allocation17 + $0x24] sm:$0xf]
        %v1642 = vld [vmem:[#allocation17 + $0x28] sm:$0xf]
        %v1643 = vld [vmem:[#allocation17 + $0x2c] sm:$0xf]
        %v1644 = vld [vmem:[#allocation17 + $0x30] sm:$0xf]
        %v1645 = vld [vmem:[#allocation17 + $0x34] sm:$0xf]
        %v1646 = vld [vmem:[#allocation17 + $0x38] sm:$0xf]
        %v1647 = vld [vmem:[#allocation17 + $0x3c] sm:$0xf]
        %v1648 = vpack.c.bf16 %v728, %v727
        %v1649 = vld [vmem:[%s13] sm:$0x1]
        %v1651 = vperm.slane %v1649, 0
        %v1669 = vunpack.c.l.b16 %v1632
        %v1670 = vunpack.c.l.b16 %v1633
        %v1671 = vunpack.c.l.b16 %v1634
        %v1672 = vunpack.c.l.b16 %v1635
        %v1673 = vunpack.c.l.b16 %v1636
        %v1674 = vunpack.c.l.b16 %v1637
        %v1675 = vunpack.c.l.b16 %v1638
        %v1676 = vunpack.c.l.b16 %v1639
        %v1677 = vunpack.c.l.b16 %v1640
        %v1678 = vunpack.c.l.b16 %v1641
        %v1679 = vunpack.c.l.b16 %v1642
        %v1680 = vunpack.c.l.b16 %v1643
        %v1681 = vunpack.c.l.b16 %v1644
        %v1682 = vunpack.c.l.b16 %v1645
        %v1683 = vunpack.c.l.b16 %v1646
        %v1684 = vunpack.c.l.b16 %v1647
        %v1685 = vpack.c.b16 %v1670, %v1669
        %v1686 = vpack.c.b16 %v1672, %v1671
        %v1687 = vpack.c.b16 %v1674, %v1673
        %v1688 = vpack.c.b16 %v1676, %v1675
        %v1689 = vpack.c.b16 %v1678, %v1677
        %v1690 = vpack.c.b16 %v1680, %v1679
        %v1691 = vpack.c.b16 %v1682, %v1681
        %v1692 = vpack.c.b16 %v1684, %v1683
        %1701 = vmatpush.bf16.msra.mxu0 %v1692
        %1702 = vmatpush.bf16.msra.mxu0 %v1691
        %1703 = vmatpush.bf16.msra.mxu0 %v1690
        %1704 = vmatpush.bf16.msra.mxu0 %v1689
        %1705 = vmatpush.bf16.msra.mxu0 %v1688
        %1706 = vmatpush.bf16.msra.mxu0 %v1687
        %1707 = vmatpush.bf16.msra.mxu0 %v1686
        %1708 = vmatpush.bf16.msra.mxu0 %v1685
        %1709 = vmatmul.bf16.gmra.mxu0 %v1648
        %v1710 = vpop.f32.mrf.mxu0
        %v1711 = vadd.f32 %v1651, %v1710
        %v1712 = vpop.f32.mrf.mxu0
        %v1713 = vadd.f32 %v1651, %v1712
        %1714 = vdwg.mxu0
        %v1715 = vld [vmem:[#allocation19] sm:$0xf]
        %v1716 = vld [vmem:[#allocation19 + $0x4] sm:$0xf]
        %v1717 = vld [vmem:[#allocation19 + $0x8] sm:$0xf]
        %v1718 = vld [vmem:[#allocation19 + $0xc] sm:$0xf]
        %v1719 = vld [vmem:[#allocation19 + $0x10] sm:$0xf]
        %v1720 = vld [vmem:[#allocation19 + $0x14] sm:$0xf]
        %v1721 = vld [vmem:[#allocation19 + $0x18] sm:$0xf]
        %v1722 = vld [vmem:[#allocation19 + $0x1c] sm:$0xf]
        %v1723 = vld [vmem:[#allocation19 + $0x20] sm:$0xf]
        %v1724 = vld [vmem:[#allocation19 + $0x24] sm:$0xf]
        %v1725 = vld [vmem:[#allocation19 + $0x28] sm:$0xf]
        %v1726 = vld [vmem:[#allocation19 + $0x2c] sm:$0xf]
        %v1727 = vld [vmem:[#allocation19 + $0x30] sm:$0xf]
        %v1728 = vld [vmem:[#allocation19 + $0x34] sm:$0xf]
        %v1729 = vld [vmem:[#allocation19 + $0x38] sm:$0xf]
        %v1730 = vld [vmem:[#allocation19 + $0x3c] sm:$0xf]
        %v1731 = vmul.f32 %v1711, 0.17677669
        %v1732 = vmul.f32 %v1713, 0.17677669
        %v1733 = vpack.c.bf16 %v1731, %v1731
        %v1734 = vpack.c.bf16 %v1732, %v1732
        %v1735 = vpack.c.bf16 %v1614, %v1614
        %v1736 = vpack.c.bf16 %v1616, %v1616
        %v1737 = vpack.c.bf16 %v1628, %v1628
        %v1738 = vpack.c.bf16 %v1630, %v1630
        %v1741 = vunpack.c.l.b16 %v1733
        %v1742 = vunpack.c.l.b16 %v1734
        %v1743 = vpack.c.b16 %v1742, %v1741
        %v1746 = vunpack.c.l.b16 %v1735
        %v1747 = vunpack.c.l.b16 %v1736
        %v1748 = vpack.c.b16 %v1747, %v1746
        %v1750 = vsel %vm1040, %v1743, 0
        %v1753 = vsel %vm1040, %v1748, 0
        %1755 = vmatpush.bf16.xpose.msra.mxu0 0
        %1756 = vmatpush.bf16.xpose.msra.mxu0 0
        %1757 = vmatpush.bf16.xpose.msra.mxu0 0
        %1758 = vmatpush.bf16.xpose.msra.mxu0 0
        %1759 = vmatpush.bf16.xpose.msra.mxu0 0
        %1760 = vmatpush.bf16.xpose.msra.mxu0 0
        %1761 = vmatpush.bf16.xpose.msra.mxu0 0
        %1762 = vmatpush.bf16.xpose.msra.mxu0 %v1753
        %1763 = vmatmul.bf16.gmra.mxu0 %v1750
        %v1764 = vpop.f32.mrf.mxu0
        %v1765 = vadd.f32 0.0, %v1764
        %v1766 = vpop.f32.mrf.mxu0
        %v1767 = vadd.f32 0.0, %v1766
        %1768 = vdwg.mxu0
        %v1769 = vsel %vm1063, %v1765, -inf
        %1770 = vmax.xlane.f32.xlu0 %v1769
        %v1771 = vpop.xlane.xlu0 %1770
        %v1772 = vsel %vm1063, %v1767, -inf
        %1773 = vmax.xlane.f32.xlu0 %v1772
        %v1774 = vpop.xlane.xlu0 %1773
        %v1775 = vsub.f32 %v1765, %v1771
        %v1776 = vsub.f32 %v1767, %v1774
        %v1777 = vmul.f32 %v1775, 1.442695
        %v1778 = vpow.pop %v1777
        %v1779 = vmul.f32 %v1776, 1.442695
        %v1780 = vpow.pop %v1779
        %v1781 = vsel %vm1063, %v1778, 0.0
        %1782 = vadd.xlane.f32.xlu0 %v1781
        %v1783 = vpop.xlane.xlu0 %1782
        %v1784 = vsel %vm1063, %v1780, 0.0
        %1785 = vadd.xlane.f32.xlu0 %v1784
        %v1786 = vpop.xlane.xlu0 %1785
        %v1787 = vrcp.pop %v1783
        %v1788 = vrcp.pop %v1786
        %v1789 = vmul.f32 %v1778, %v1787
        %v1790 = vmul.f32 %v1780, %v1788
        %v1791 = vpack.c.bf16 %v1790, %v1789
        %v1794 = vunpack.c.l.b16 %v1737
        %v1795 = vunpack.c.l.b16 %v1738
        %v1796 = vpack.c.b16 %v1795, %v1794
        %v1799 = vsel %vm1063, %v1791, 0
        %1801 = vmatpush.bf16.msra.mxu0 0
        %1802 = vmatpush.bf16.msra.mxu0 0
        %1803 = vmatpush.bf16.msra.mxu0 0
        %1804 = vmatpush.bf16.msra.mxu0 0
        %1805 = vmatpush.bf16.msra.mxu0 0
        %1806 = vmatpush.bf16.msra.mxu0 0
        %1807 = vmatpush.bf16.msra.mxu0 0
        %1808 = vmatpush.bf16.msra.mxu0 %v1796
        %1809 = vmatmul.bf16.gmra.mxu0 %v1799
        %v1810 = vpop.f32.mrf.mxu0
        %v1811 = vadd.f32 0.0, %v1810
        %v1812 = vpop.f32.mrf.mxu0
        %v1813 = vadd.f32 0.0, %v1812
        %1814 = vdwg.mxu0
        %v1815 = vpack.c.bf16 %v1813, %v1811
        %1816 = vrot.lane.b32.xlu0 %v1743, 96
        %v1817 = vpop.permute.xlu0 %1816
        %1818 = vrot.lane.b32.xlu0 %v1748, 96
        %v1819 = vpop.permute.xlu0 %1818
        %v1821 = vsel %vm1040, %v1817, 0
        %v1824 = vsel %vm1040, %v1819, 0
        %1826 = vmatpush.bf16.xpose.msra.mxu0 0
        %1827 = vmatpush.bf16.xpose.msra.mxu0 0
        %1828 = vmatpush.bf16.xpose.msra.mxu0 0
        %1829 = vmatpush.bf16.xpose.msra.mxu0 0
        %1830 = vmatpush.bf16.xpose.msra.mxu0 0
        %1831 = vmatpush.bf16.xpose.msra.mxu0 0
        %1832 = vmatpush.bf16.xpose.msra.mxu0 0
        %1833 = vmatpush.bf16.xpose.msra.mxu0 %v1824
        %1834 = vmatmul.bf16.gmra.mxu0 %v1821
        %v1835 = vpop.f32.mrf.mxu0
        %v1836 = vadd.f32 0.0, %v1835
        %v1837 = vpop.f32.mrf.mxu0
        %v1838 = vadd.f32 0.0, %v1837
        %1839 = vdwg.mxu0
        %v1840 = vsel %vm1063, %v1836, -inf
        %1841 = vmax.xlane.f32.xlu0 %v1840
        %v1842 = vpop.xlane.xlu0 %1841
        %v1843 = vsel %vm1063, %v1838, -inf
        %1844 = vmax.xlane.f32.xlu0 %v1843
        %v1845 = vpop.xlane.xlu0 %1844
        %v1846 = vsub.f32 %v1836, %v1842
        %v1847 = vsub.f32 %v1838, %v1845
        %v1848 = vmul.f32 %v1846, 1.442695
        %v1849 = vpow.pop %v1848
        %v1850 = vmul.f32 %v1847, 1.442695
        %v1851 = vpow.pop %v1850
        %v1852 = vsel %vm1063, %v1849, 0.0
        %1853 = vadd.xlane.f32.xlu0 %v1852
        %v1854 = vpop.xlane.xlu0 %1853
        %v1855 = vsel %vm1063, %v1851, 0.0
        %1856 = vadd.xlane.f32.xlu0 %v1855
        %v1857 = vpop.xlane.xlu0 %1856
        %v1858 = vrcp.pop %v1854
        %v1859 = vrcp.pop %v1857
        %v1860 = vmul.f32 %v1849, %v1858
        %v1861 = vmul.f32 %v1851, %v1859
        %v1862 = vpack.c.bf16 %v1861, %v1860
        %1863 = vrot.lane.b32.xlu0 %v1796, 96
        %v1864 = vpop.permute.xlu0 %1863
        %v1867 = vsel %vm1063, %v1862, 0
        %1869 = vmatpush.bf16.msra.mxu0 0
        %1870 = vmatpush.bf16.msra.mxu0 0
        %1871 = vmatpush.bf16.msra.mxu0 0
        %1872 = vmatpush.bf16.msra.mxu0 0
        %1873 = vmatpush.bf16.msra.mxu0 0
        %1874 = vmatpush.bf16.msra.mxu0 0
        %1875 = vmatpush.bf16.msra.mxu0 0
        %1876 = vmatpush.bf16.msra.mxu0 %v1864
        %1877 = vmatmul.bf16.gmra.mxu0 %v1867
        %v1878 = vpop.f32.mrf.mxu0
        %v1879 = vadd.f32 0.0, %v1878
        %v1880 = vpop.f32.mrf.mxu0
        %v1881 = vadd.f32 0.0, %v1880
        %1882 = vdwg.mxu0
        %v1883 = vpack.c.bf16 %v1881, %v1879
        %v1888 = vunpack.c.l.b16 %v1719
        %v1889 = vunpack.c.l.b16 %v1720
        %v1890 = vunpack.c.l.b16 %v1721
        %v1891 = vunpack.c.l.b16 %v1722
        %v1892 = vpack.c.b16 %v1889, %v1888
        %v1893 = vpack.c.b16 %v1891, %v1890
        %v1897 = vsel %vm1040, %v1883, 0
        %1899 = vmatpush.bf16.msra.mxu0 0
        %1900 = vmatpush.bf16.msra.mxu0 0
        %1901 = vmatpush.bf16.msra.mxu0 0
        %1902 = vmatpush.bf16.msra.mxu0 0
        %1903 = vmatpush.bf16.msra.mxu0 0
        %1904 = vmatpush.bf16.msra.mxu0 0
        %1905 = vmatpush.bf16.msra.mxu0 %v1893
        %1906 = vmatpush.bf16.msra.mxu0 %v1892
        %1907 = vmatmul.bf16.gmra.mxu0 %v1897
        %v1908 = vpop.f32.mrf.mxu0
        %v1909 = vadd.f32 0.0, %v1908
        %v1910 = vpop.f32.mrf.mxu0
        %v1911 = vadd.f32 0.0, %v1910
        %1912 = vdwg.mxu0
        %v1917 = vunpack.c.l.b16 %v1715
        %v1918 = vunpack.c.l.b16 %v1716
        %v1919 = vunpack.c.l.b16 %v1717
        %v1920 = vunpack.c.l.b16 %v1718
        %v1921 = vpack.c.b16 %v1918, %v1917
        %v1922 = vpack.c.b16 %v1920, %v1919
        %v1926 = vsel %vm1040, %v1815, 0
        %1928 = vmatpush.bf16.msra.mxu0 0
        %1929 = vmatpush.bf16.msra.mxu0 0
        %1930 = vmatpush.bf16.msra.mxu0 0
        %1931 = vmatpush.bf16.msra.mxu0 0
        %1932 = vmatpush.bf16.msra.mxu0 0
        %1933 = vmatpush.bf16.msra.mxu0 0
        %1934 = vmatpush.bf16.msra.mxu0 %v1922
        %1935 = vmatpush.bf16.msra.mxu0 %v1921
        %1936 = vmatmul.bf16.gmra.mxu0 %v1926
        %v1937 = vpop.f32.mrf.mxu0
        %v1938 = vadd.f32 %v1909, %v1937
        %v1939 = vpop.f32.mrf.mxu0
        %v1940 = vadd.f32 %v1911, %v1939
        %1941 = vdwg.mxu0
        %1942 = vrot.lane.b32.xlu0 %v1743, 64
        %v1943 = vpop.permute.xlu0 %1942
        %1944 = vrot.lane.b32.xlu0 %v1748, 64
        %v1945 = vpop.permute.xlu0 %1944
        %v1947 = vsel %vm1040, %v1943, 0
        %v1950 = vsel %vm1040, %v1945, 0
        %1952 = vmatpush.bf16.xpose.msra.mxu0 0
        %1953 = vmatpush.bf16.xpose.msra.mxu0 0
        %1954 = vmatpush.bf16.xpose.msra.mxu0 0
        %1955 = vmatpush.bf16.xpose.msra.mxu0 0
        %1956 = vmatpush.bf16.xpose.msra.mxu0 0
        %1957 = vmatpush.bf16.xpose.msra.mxu0 0
        %1958 = vmatpush.bf16.xpose.msra.mxu0 0
        %1959 = vmatpush.bf16.xpose.msra.mxu0 %v1950
        %1960 = vmatmul.bf16.gmra.mxu0 %v1947
        %v1961 = vpop.f32.mrf.mxu0
        %v1962 = vadd.f32 0.0, %v1961
        %v1963 = vpop.f32.mrf.mxu0
        %v1964 = vadd.f32 0.0, %v1963
        %1965 = vdwg.mxu0
        %v1966 = vsel %vm1063, %v1962, -inf
        %1967 = vmax.xlane.f32.xlu0 %v1966
        %v1968 = vpop.xlane.xlu0 %1967
        %v1969 = vsel %vm1063, %v1964, -inf
        %1970 = vmax.xlane.f32.xlu0 %v1969
        %v1971 = vpop.xlane.xlu0 %1970
        %v1972 = vsub.f32 %v1962, %v1968
        %v1973 = vsub.f32 %v1964, %v1971
        %v1974 = vmul.f32 %v1972, 1.442695
        %v1975 = vpow.pop %v1974
        %v1976 = vmul.f32 %v1973, 1.442695
        %v1977 = vpow.pop %v1976
        %v1978 = vsel %vm1063, %v1975, 0.0
        %1979 = vadd.xlane.f32.xlu0 %v1978
        %v1980 = vpop.xlane.xlu0 %1979
        %v1981 = vsel %vm1063, %v1977, 0.0
        %1982 = vadd.xlane.f32.xlu0 %v1981
        %v1983 = vpop.xlane.xlu0 %1982
        %v1984 = vrcp.pop %v1980
        %v1985 = vrcp.pop %v1983
        %v1986 = vmul.f32 %v1975, %v1984
        %v1987 = vmul.f32 %v1977, %v1985
        %v1988 = vpack.c.bf16 %v1987, %v1986
        %1989 = vrot.lane.b32.xlu0 %v1796, 64
        %v1990 = vpop.permute.xlu0 %1989
        %v1993 = vsel %vm1063, %v1988, 0
        %1995 = vmatpush.bf16.msra.mxu0 0
        %1996 = vmatpush.bf16.msra.mxu0 0
        %1997 = vmatpush.bf16.msra.mxu0 0
        %1998 = vmatpush.bf16.msra.mxu0 0
        %1999 = vmatpush.bf16.msra.mxu0 0
        %2000 = vmatpush.bf16.msra.mxu0 0
        %2001 = vmatpush.bf16.msra.mxu0 0
        %2002 = vmatpush.bf16.msra.mxu0 %v1990
        %2003 = vmatmul.bf16.gmra.mxu0 %v1993
        %v2004 = vpop.f32.mrf.mxu0
        %v2005 = vadd.f32 0.0, %v2004
        %v2006 = vpop.f32.mrf.mxu0
        %v2007 = vadd.f32 0.0, %v2006
        %2008 = vdwg.mxu0
        %v2009 = vpack.c.bf16 %v2007, %v2005
        %v2014 = vunpack.c.l.b16 %v1723
        %v2015 = vunpack.c.l.b16 %v1724
        %v2016 = vunpack.c.l.b16 %v1725
        %v2017 = vunpack.c.l.b16 %v1726
        %v2018 = vpack.c.b16 %v2015, %v2014
        %v2019 = vpack.c.b16 %v2017, %v2016
        %v2023 = vsel %vm1040, %v2009, 0
        %2025 = vmatpush.bf16.msra.mxu0 0
        %2026 = vmatpush.bf16.msra.mxu0 0
        %2027 = vmatpush.bf16.msra.mxu0 0
        %2028 = vmatpush.bf16.msra.mxu0 0
        %2029 = vmatpush.bf16.msra.mxu0 0
        %2030 = vmatpush.bf16.msra.mxu0 0
        %2031 = vmatpush.bf16.msra.mxu0 %v2019
        %2032 = vmatpush.bf16.msra.mxu0 %v2018
        %2033 = vmatmul.bf16.gmra.mxu0 %v2023
        %v2034 = vpop.f32.mrf.mxu0
        %v2035 = vadd.f32 0.0, %v2034
        %v2036 = vpop.f32.mrf.mxu0
        %v2037 = vadd.f32 0.0, %v2036
        %2038 = vdwg.mxu0
        %v2039 = vadd.f32 %v1938, %v2035
        %v2040 = vadd.f32 %v1940, %v2037
        %2041 = vrot.lane.b32.xlu0 %v1743, 32
        %v2042 = vpop.permute.xlu0 %2041
        %2043 = vrot.lane.b32.xlu0 %v1748, 32
        %v2044 = vpop.permute.xlu0 %2043
        %v2046 = vsel %vm1040, %v2042, 0
        %v2049 = vsel %vm1040, %v2044, 0
        %2051 = vmatpush.bf16.xpose.msra.mxu0 0
        %2052 = vmatpush.bf16.xpose.msra.mxu0 0
        %2053 = vmatpush.bf16.xpose.msra.mxu0 0
        %2054 = vmatpush.bf16.xpose.msra.mxu0 0
        %2055 = vmatpush.bf16.xpose.msra.mxu0 0
        %2056 = vmatpush.bf16.xpose.msra.mxu0 0
        %2057 = vmatpush.bf16.xpose.msra.mxu0 0
        %2058 = vmatpush.bf16.xpose.msra.mxu0 %v2049
        %2059 = vmatmul.bf16.gmra.mxu0 %v2046
        %v2060 = vpop.f32.mrf.mxu0
        %v2061 = vadd.f32 0.0, %v2060
        %v2062 = vpop.f32.mrf.mxu0
        %v2063 = vadd.f32 0.0, %v2062
        %2064 = vdwg.mxu0
        %v2065 = vsel %vm1063, %v2061, -inf
        %2066 = vmax.xlane.f32.xlu0 %v2065
        %v2067 = vpop.xlane.xlu0 %2066
        %v2068 = vsel %vm1063, %v2063, -inf
        %2069 = vmax.xlane.f32.xlu0 %v2068
        %v2070 = vpop.xlane.xlu0 %2069
        %v2071 = vsub.f32 %v2061, %v2067
        %v2072 = vsub.f32 %v2063, %v2070
        %v2073 = vmul.f32 %v2071, 1.442695
        %v2074 = vpow.pop %v2073
        %v2075 = vmul.f32 %v2072, 1.442695
        %v2076 = vpow.pop %v2075
        %v2077 = vsel %vm1063, %v2074, 0.0
        %2078 = vadd.xlane.f32.xlu0 %v2077
        %v2079 = vpop.xlane.xlu0 %2078
        %v2080 = vsel %vm1063, %v2076, 0.0
        %2081 = vadd.xlane.f32.xlu0 %v2080
        %v2082 = vpop.xlane.xlu0 %2081
        %v2083 = vrcp.pop %v2079
        %v2084 = vrcp.pop %v2082
        %v2085 = vmul.f32 %v2074, %v2083
        %v2086 = vmul.f32 %v2076, %v2084
        %v2087 = vpack.c.bf16 %v2086, %v2085
        %2088 = vrot.lane.b32.xlu0 %v1796, 32
        %v2089 = vpop.permute.xlu0 %2088
        %v2092 = vsel %vm1063, %v2087, 0
        %2094 = vmatpush.bf16.msra.mxu0 0
        %2095 = vmatpush.bf16.msra.mxu0 0
        %2096 = vmatpush.bf16.msra.mxu0 0
        %2097 = vmatpush.bf16.msra.mxu0 0
        %2098 = vmatpush.bf16.msra.mxu0 0
        %2099 = vmatpush.bf16.msra.mxu0 0
        %2100 = vmatpush.bf16.msra.mxu0 0
        %2101 = vmatpush.bf16.msra.mxu0 %v2089
        %2102 = vmatmul.bf16.gmra.mxu0 %v2092
        %v2103 = vpop.f32.mrf.mxu0
        %v2104 = vadd.f32 0.0, %v2103
        %v2105 = vpop.f32.mrf.mxu0
        %v2106 = vadd.f32 0.0, %v2105
        %2107 = vdwg.mxu0
        %v2108 = vpack.c.bf16 %v2106, %v2104
        %v2113 = vunpack.c.l.b16 %v1727
        %v2114 = vunpack.c.l.b16 %v1728
        %v2115 = vunpack.c.l.b16 %v1729
        %v2116 = vunpack.c.l.b16 %v1730
        %v2117 = vpack.c.b16 %v2114, %v2113
        %v2118 = vpack.c.b16 %v2116, %v2115
        %v2122 = vsel %vm1040, %v2108, 0
        %2124 = vmatpush.bf16.msra.mxu0 0
        %2125 = vmatpush.bf16.msra.mxu0 0
        %2126 = vmatpush.bf16.msra.mxu0 0
        %2127 = vmatpush.bf16.msra.mxu0 0
        %2128 = vmatpush.bf16.msra.mxu0 0
        %2129 = vmatpush.bf16.msra.mxu0 0
        %2130 = vmatpush.bf16.msra.mxu0 %v2118
        %2131 = vmatpush.bf16.msra.mxu0 %v2117
        %2132 = vmatmul.bf16.gmra.mxu0 %v2122
        %v2133 = vpop.f32.mrf.mxu0
        %v2134 = vadd.f32 0.0, %v2133
        %v2135 = vpop.f32.mrf.mxu0
        %v2136 = vadd.f32 0.0, %v2135
        %2137 = vdwg.mxu0
        %v2138 = vadd.f32 %v2039, %v2134
        %v2139 = vadd.f32 %v2040, %v2136
        %v2140 = vadd.f32 %v1447, %v2138
        %v2141 = vadd.f32 %v1448, %v2139
        %v2142 = vld [vmem:[%s15] sm:$0x1]
        %v2144 = vperm.slane %v2142, 0
        %v2146 = vadd.f32 %v2140, %v2144
        %v2147 = vadd.f32 %v2141, %v2144
        %2148 = vst [vmem:[%s723] sm:$0xff] %v2146
        %2149 = vst [vmem:[%s723 + $0x8] sm:$0xff] %v2147
        %s2150 = sand.u32 %s394, 1
        %s2151 = scalar_lea.sflag [#allocation4], %s2150
        %s2152 = sand.u32 %s394, 1
        %s2153 = smul.addr %s2152, 16
        %s2154 = scalar_lea.vmem [#allocation20], %s2153
        // Predicated region
        $region129: #{tpu_custom_call.1} parent=83 // pred_check
          %p2155 = pneg %p404
        $region130: #{tpu_custom_call.1} parent=83 // pred_check_branch
          %2157 = sbr.rel (%p2155) target = $region132
        $region131: #{tpu_custom_call.1} parent=83 // pred_region
          %2159 = vsyncadd %s2151, 0
          %s2160 = smul.addr %s40, 2
          %s2161 = smul.addr %s2160, 8
          %s2162 = scalar_lea.hbm %s16, %s2161
          %s2163 = sshll.u32 %s2154, 4
          %s2164 = int_to_ptr.vmem [resolvable:$true] %s2163
          %s2165 = sshll.u32 %s2162, 4
          %s2166 = int_to_ptr.hbm [resolvable:$true] %s2165
          %2171 = dma.vmem_to_hbm [thread:$0]  %s2164, 256, %s2166, %s2151, 128, 128, 8
        $region132: #{tpu_custom_call.1} parent=83 // pred_fallthru
          _
      $region84: #{tpu_custom_call.1} parent=5 // pred_fallthru
        _
      %p2172 = scmp.le.s32.totalorder 2, %s35
      // Predicated region
      $region133: #{tpu_custom_call.1} parent=5 // pred_check
        %p2173 = pneg %p2172
      $region134: #{tpu_custom_call.1} parent=5 // pred_check_branch
        %2175 = sbr.rel (%p2173) target = $region136
      $region135: #{tpu_custom_call.1} parent=5 // pred_region
        %s2176 = ssub.s32 %s35, 2
        // Predicated region
        $region137: #{tpu_custom_call.1} parent=135 // pred_check
          %p2177 = pneg %p410
        $region138: #{tpu_custom_call.1} parent=135 // pred_check_branch
          %2179 = sbr.rel (%p2177) target = $region140
        $region139: #{tpu_custom_call.1} parent=135 // pred_region
          %s2180 = sand.u32 %s395, 1
          %s2181 = scalar_lea.sflag [#allocation4], %s2180
          %s2182 = sand.u32 %s395, 1
          %s2183 = smul.addr %s2182, 16
          %s2184 = scalar_lea.vmem [#allocation20], %s2183
          %2186 = dma.done %s2181, 256
        $region140: #{tpu_custom_call.1} parent=135 // pred_fallthru
          _
      $region136: #{tpu_custom_call.1} parent=5 // pred_fallthru
        _
    $region6: #{tpu_custom_call.1} parent=1 // loop_footer
      %s39 = sadd.s32 1, %s35
    $region7: #{tpu_custom_call.1} parent=1 // loop_footer_branch
      %34 = sbr.rel target = $region3
    $region8: #{tpu_custom_call.1} parent=1 // loop_exit
      _
    %2187 = vsyncpa [#allocation3], 1
    %s2188 = scalar_lea.sflag [#allocation3], 1
    %2189 = vsyncpa %s2188, 1
    %2190 = vsyncpa [#allocation6], 1
    %s2191 = scalar_lea.sflag [#allocation6], 1
    %2192 = vsyncpa %s2191, 1
    %2193 = vsyncpa [#allocation9], 1
    %2194 = vsyncpa [#allocation12], 1
    %2195 = vsyncpa [#allocation15], 1
    %2196 = vsyncpa [#allocation18], 1
    %2197 = vsyncpa [#allocation4], 1
    %s2198 = scalar_lea.sflag [#allocation4], 1
    %2199 = vsyncpa %s2198, 1

</llo_original>
